<compile_context>
chip_gen: v7x
topology: tpu7x:2x2x1
jax: 0.10.0
libtpu: 0.0.40
codegen_flags: <defaults>
</compile_context>

<pallas_src>
import math

import jax
import jax.numpy as jnp
import numpy as np
from jax.experimental import pallas as pl
from jax.experimental.pallas import tpu as pltpu


# ------------------------------ Pallas kernel --------------------------------

def fused_forward_kernel(x_ref, w1a_ref, w1b_ref, b1_ref,
                         w2ef_ref, w2ep_ref, w2of_ref, w2k4_ref, b2_ref,
                         fc1w_ref, fc1b_ref, fc2w_ref, fc2b_ref,
                         out_ref, feat_ref):
    """Whole forward pass: conv1+ReLU+pool, conv2+ReLU+pool, flatten, fc1+ReLU, fc2."""
    B = x_ref.shape[0]
    f32 = jnp.float32

    w1a, w1b, b1c = w1a_ref[...], w1b_ref[...], b1_ref[...]
    w2ef, w2ep = w2ef_ref[...], w2ep_ref[...]
    w2of, w2k4, b2c = w2of_ref[...], w2k4_ref[...], b2_ref[...]

    # Mask for the pooled-conv1 phase matrix H1 (rows = s*16 + ci, cols = position+1):
    #  col 0  -> position -1 (left zero pad of conv2)
    #  col 33 -> position 32 (right zero pad)
    #  col 32 of the s=3 block -> h1[127], which lies in conv2's zero-pad region.
    rows = jax.lax.broadcasted_iota(jnp.int32, (64, 34), 0)
    cols = jax.lax.broadcasted_iota(jnp.int32, (64, 34), 1)
    h1_pad = (cols == 0) | (cols == 33) | ((cols == 32) & (rows >= 48))

    for b in range(B):                                        # B is small & static
        xb = x_ref[b]                                         # (32, 35) [sample-in-block, block]

        # conv1 (Cin=1, K=11, stride=4, pad=1): all 8 output phases at once.
        # Rows of y1 = phase-block*16 + channel (even phases 0,2,4,6 first, then odd).
        y1 = (jnp.dot(w1a, xb[:, 0:34], preferred_element_type=f32)
              + jnp.dot(w1b, xb[:, 1:35], preferred_element_type=f32)
              + b1c)                                          # (128, 34)

        # ReLU + MaxPool1d(2): even/odd conv1 phases are exactly the two pool candidates.
        h1 = jnp.maximum(jnp.maximum(y1[0:64, :], y1[64:128, :]), 0.0)
        h1 = jnp.where(h1_pad, 0.0, h1)                       # (64, 34)

        # conv2 (16->16, K=5, stride=2, pad=2): even / odd output positions separately.
        y2e = (jnp.dot(w2ef, h1[0:48, 1:33], preferred_element_type=f32)
               + jnp.dot(w2ep, h1[32:64, 0:32], preferred_element_type=f32)
               + b2c)                                         # (16, 32)
        y2o = (jnp.dot(w2of, h1[:, 1:33], preferred_element_type=f32)
               + jnp.dot(w2k4, h1[0:16, 2:34], preferred_element_type=f32)
               + b2c)                                         # (16, 32)

        # ReLU + MaxPool1d(2) = max of the even/odd conv2 phases.
        h2 = jnp.maximum(jnp.maximum(y2e, y2o), 0.0)          # (16, 32) [channel, position]

        # torch.flatten(x, 1) is channel-major (index = c*32 + v): assemble in scratch.
        for c in range(16):
            feat_ref[b:b + 1, c * 32:(c + 1) * 32] = h2[c:c + 1, :]

    # fc head for the whole batch in two matmuls.
    feat = feat_ref[...]                                      # (B, 512)
    hid = jnp.maximum(
        jnp.dot(feat, fc1w_ref[...], preferred_element_type=f32) + fc1b_ref[...], 0.0)
    out_ref[...] = jnp.dot(hid, fc2w_ref[...], preferred_element_type=f32) + fc2b_ref[...]


# --------------------- one-time weight repacking (hoisted) --------------------

_PHASE_ORDER = (0, 2, 4, 6, 1, 3, 5, 7)   # even conv1 output phases first, then odd


def prepare_params(params):
    """Repack torch-layout parameters into the kernel's matmul operands (call once)."""
    w1, b1, w2, b2, fc1_w, fc1_b, fc2_w, fc2_b = [jnp.asarray(p, jnp.float32) for p in params]

    # conv1 weights expanded over the 8 output-position phases (stride 4, K=11):
    # y1[phase p, ch c, n] = sum_g sum_j W1[g][block(p)*16+c, j] * x32t[j, n+g+1].
    w1k = w1[:, 0, :]                                          # (16, 11)
    w1cat = []
    for g in (0, 1):
        blocks = []
        for p in _PHASE_ORDER:
            col_list = []
            for j in range(32):
                k = j + 32 * g - 4 * p
                col_list.append(w1k[:, k] if 0 <= k < 11 else jnp.zeros((16,), jnp.float32))
            blocks.append(jnp.stack(col_list, axis=1))         # (16, 32)
        w1cat.append(jnp.concatenate(blocks, axis=0))          # (128, 32)
    b1cat = jnp.tile(b1, 8).reshape(128, 1)

    # conv2 taps stacked to match the H1 phase-row blocks (s = 0..3).
    wk = [w2[:, :, k] for k in range(5)]                       # (16, 16) [cout, cin]
    w2e_full = jnp.concatenate([wk[2], wk[3], wk[4]], axis=1)  # (16, 48)
    w2e_part = jnp.concatenate([wk[0], wk[1]], axis=1)         # (16, 32)
    w2o_full = jnp.concatenate(wk[:4], axis=1)                 # (16, 64)
    w2_k4 = wk[4]                                              # (16, 16)
    b2col = b2.reshape(16, 1)

    return (w1cat[0], w1cat[1], b1cat,
            w2e_full, w2e_part, w2o_full, w2_k4, b2col,
            fc1_w.T, fc1_b.reshape(1, -1), fc2_w.T, fc2_b.reshape(1, -1))


# ------------------------------- forward wrapper ------------------------------

def conv1d_multi_classifier_forward(x, prep):
    B = x.shape[0]
    xf = x.reshape(B, -1).astype(jnp.float32)
    assert xf.shape[1] == 1024, "fc head (512 features) implies 1024 input samples/example"

    # Zero-embed the signal into 35 blocks of 32 samples (covers conv1's padding=1 plus the
    # one-block halo needed by the in-kernel phase slices), then put blocks on the lane axis.
    xpad = jnp.pad(xf, ((0, 0), (33, 63)))                     # (B, 1120)
    x32t = xpad.reshape(B, 35, 32).transpose(0, 2, 1)          # (B, 32, 35)

    n_classes = prep[-2].shape[1]
    vmem = pl.BlockSpec(memory_space=pltpu.MemorySpace.VMEM)
    return pl.pallas_call(
        fused_forward_kernel,
        out_shape=jax.ShapeDtypeStruct((B, n_classes), jnp.float32),
        in_specs=[vmem] * 13,
        out_specs=vmem,
        scratch_shapes=[pltpu.VMEM((B, 512), jnp.float32)],
    )(x32t, *prep)
    # TODO(synk): for large batches, make the batch a "parallel" grid axis instead of the
    # unrolled in-kernel loop.


# ----------------------------- pure-JAX reference -----------------------------

def reference_forward(x, params):
    w1, b1, w2, b2, fc1_w, fc1_b, fc2_w, fc2_b = params
    B = x.shape[0]
    y = x.reshape(B, 1, -1).astype(jnp.float32)

    def conv1d(inp, w, b, stride, pad):
        o = jax.lax.conv_general_dilated(
            inp, w, window_strides=(stride,), padding=[(pad, pad)],
            dimension_numbers=("NCH", "OIH", "NCH"),
            precision=jax.lax.Precision.HIGHEST)
        return o + b[None, :, None]

    def maxpool2(z):
        L = z.shape[2] // 2
        return z[:, :, :2 * L].reshape(z.shape[0], z.shape[1], L, 2).max(axis=-1)

    y = maxpool2(jnp.maximum(conv1d(y, w1, b1, 4, 1), 0.0))
    y = maxpool2(jnp.maximum(conv1d(y, w2, b2, 2, 2), 0.0))
    y = y.reshape(B, -1)
    y = jnp.maximum(y @ fc1_w.T + fc1_b, 0.0)
    return y @ fc2_w.T + fc2_b


# ------------------------------------ main -------------------------------------

if __name__ == "__main__":
    n_classes = 10
    key = jax.random.PRNGKey(0)
    ks = jax.random.split(key, 9)

    def uinit(k, shape, fan_in):
        bound = 1.0 / math.sqrt(fan_in)
        return jax.random.uniform(k, shape, jnp.float32, -bound, bound)

    params = (
        uinit(ks[0], (16, 1, 11), 1 * 11),     # conv1 weight (Cout, Cin, K)
        uinit(ks[1], (16,), 1 * 11),           # conv1 bias
        uinit(ks[2], (16, 16, 5), 16 * 5),     # conv2 weight
        uinit(ks[3], (16,), 16 * 5),           # conv2 bias
        uinit(ks[4], (64, 512), 512),          # fc1 weight (out, in)
        uinit(ks[5], (64,), 512),              # fc1 bias
        uinit(ks[6], (n_classes, 64), 64),     # fc2 weight
        uinit(ks[7], (n_classes,), 64),        # fc2 bias
    )

    prep = prepare_params(params)              # one-time weight repacking (hoisted)

    # fc head requires 512 = 16 channels * 32 positions -> 1024 samples per example;
    # the module reshapes any input to (B, 1, -1).
    x = jax.random.normal(ks[8], (2, 32, 32), jnp.float32)

    fwd = jax.jit(conv1d_multi_classifier_forward)
    out = jax.block_until_ready(fwd(x, prep))
    ref = jax.block_until_ready(reference_forward(x, params))

    assert out.shape == (2, n_classes)
    np.testing.assert_allclose(np.asarray(out), np.asarray(ref), rtol=2e-2, atol=2e-2)
    print("KERNEL_OK")
</pallas_src>

<mosaic_0001>
module attributes {stable_mosaic.version = 11 : i64} {
  func.func @fused_forward_kernel(%arg0: memref<2x32x35xf32, #tpu.memory_space<vmem>>, %arg1: memref<128x32xf32, #tpu.memory_space<vmem>>, %arg2: memref<128x32xf32, #tpu.memory_space<vmem>>, %arg3: memref<128x1xf32, #tpu.memory_space<vmem>>, %arg4: memref<16x48xf32, #tpu.memory_space<vmem>>, %arg5: memref<16x32xf32, #tpu.memory_space<vmem>>, %arg6: memref<16x64xf32, #tpu.memory_space<vmem>>, %arg7: memref<16x16xf32, #tpu.memory_space<vmem>>, %arg8: memref<16x1xf32, #tpu.memory_space<vmem>>, %arg9: memref<512x64xf32, #tpu.memory_space<vmem>>, %arg10: memref<1x64xf32, #tpu.memory_space<vmem>>, %arg11: memref<64x10xf32, #tpu.memory_space<vmem>>, %arg12: memref<1x10xf32, #tpu.memory_space<vmem>>, %arg13: memref<2x10xf32, #tpu.memory_space<vmem>>, %arg14: memref<2x512xf32, #tpu.memory_space<vmem>>) attributes {dimension_semantics = [], scalar_prefetch = 0 : i64, scratch_operands = 1 : i64, tpu.core_type = #tpu.core_type<tc>} {
    %c0 = arith.constant 0 : index
    %c0_0 = arith.constant 0 : index
    %0 = vector.load %arg1[%c0, %c0_0] : memref<128x32xf32, #tpu.memory_space<vmem>>, vector<128x32xf32>
    %c0_1 = arith.constant 0 : index
    %c0_2 = arith.constant 0 : index
    %1 = vector.load %arg2[%c0_1, %c0_2] : memref<128x32xf32, #tpu.memory_space<vmem>>, vector<128x32xf32>
    %c0_3 = arith.constant 0 : index
    %c0_4 = arith.constant 0 : index
    %2 = vector.load %arg3[%c0_3, %c0_4] : memref<128x1xf32, #tpu.memory_space<vmem>>, vector<128x1xf32>
    %c0_5 = arith.constant 0 : index
    %c0_6 = arith.constant 0 : index
    %3 = vector.load %arg4[%c0_5, %c0_6] : memref<16x48xf32, #tpu.memory_space<vmem>>, vector<16x48xf32>
    %c0_7 = arith.constant 0 : index
    %c0_8 = arith.constant 0 : index
    %4 = vector.load %arg5[%c0_7, %c0_8] : memref<16x32xf32, #tpu.memory_space<vmem>>, vector<16x32xf32>
    %c0_9 = arith.constant 0 : index
    %c0_10 = arith.constant 0 : index
    %5 = vector.load %arg6[%c0_9, %c0_10] : memref<16x64xf32, #tpu.memory_space<vmem>>, vector<16x64xf32>
    %c0_11 = arith.constant 0 : index
    %c0_12 = arith.constant 0 : index
    %6 = vector.load %arg7[%c0_11, %c0_12] : memref<16x16xf32, #tpu.memory_space<vmem>>, vector<16x16xf32>
    %c0_13 = arith.constant 0 : index
    %c0_14 = arith.constant 0 : index
    %7 = vector.load %arg8[%c0_13, %c0_14] : memref<16x1xf32, #tpu.memory_space<vmem>>, vector<16x1xf32>
    %8 = tpu.iota {dimensions = array<i32: 0>} : vector<64x34xi32>
    %9 = tpu.iota {dimensions = array<i32: 1>} : vector<64x34xi32>
    %c0_i32 = arith.constant 0 : i32
    %10 = vector.broadcast %c0_i32 : i32 to vector<64x34xi32>
    %11 = arith.cmpi eq, %9, %10 : vector<64x34xi32>
    %c33_i32 = arith.constant 33 : i32
    %12 = vector.broadcast %c33_i32 : i32 to vector<64x34xi32>
    %13 = arith.cmpi eq, %9, %12 : vector<64x34xi32>
    %14 = arith.ori %11, %13 : vector<64x34xi1>
    %c32_i32 = arith.constant 32 : i32
    %15 = vector.broadcast %c32_i32 : i32 to vector<64x34xi32>
    %16 = arith.cmpi eq, %9, %15 : vector<64x34xi32>
    %c48_i32 = arith.constant 48 : i32
    %17 = vector.broadcast %c48_i32 : i32 to vector<64x34xi32>
    %18 = arith.cmpi sge, %8, %17 : vector<64x34xi32>
    %19 = arith.andi %16, %18 : vector<64x34xi1>
    %20 = arith.ori %14, %19 : vector<64x34xi1>
    %c0_15 = arith.constant 0 : index
    %c0_16 = arith.constant 0 : index
    %c0_17 = arith.constant 0 : index
    %21 = vector.load %arg0[%c0_15, %c0_16, %c0_17] : memref<2x32x35xf32, #tpu.memory_space<vmem>>, vector<1x32x35xf32>
    %22 = vector.shape_cast %21 : vector<1x32x35xf32> to vector<32x35xf32>
    %23 = vector.extract_strided_slice %22 {offsets = [0, 0], sizes = [32, 34], strides = [1, 1]} : vector<32x35xf32> to vector<32x34xf32>
    %cst = arith.constant dense<0.000000e+00> : vector<128x34xf32>
    %24 = tpu.matmul %0, %23, %cst {dimension_numbers = #tpu.dot_dimension_numbers<[1], [0], [0], [1], [0, 0, 1, 1], [], []>} : vector<128x32xf32>, vector<32x34xf32>, vector<128x34xf32> -> vector<128x34xf32>
    %25 = vector.extract_strided_slice %22 {offsets = [0, 1], sizes = [32, 34], strides = [1, 1]} : vector<32x35xf32> to vector<32x34xf32>
    %cst_18 = arith.constant dense<0.000000e+00> : vector<128x34xf32>
    %26 = tpu.matmul %1, %25, %cst_18 {dimension_numbers = #tpu.dot_dimension_numbers<[1], [0], [0], [1], [0, 0, 1, 1], [], []>} : vector<128x32xf32>, vector<32x34xf32>, vector<128x34xf32> -> vector<128x34xf32>
    %27 = arith.addf %24, %26 : vector<128x34xf32>
    %28 = vector.broadcast %2 : vector<128x1xf32> to vector<128x34xf32>
    %29 = arith.addf %27, %28 : vector<128x34xf32>
    %30 = vector.extract_strided_slice %29 {offsets = [0, 0], sizes = [64, 34], strides = [1, 1]} : vector<128x34xf32> to vector<64x34xf32>
    %31 = vector.extract_strided_slice %29 {offsets = [64, 0], sizes = [64, 34], strides = [1, 1]} : vector<128x34xf32> to vector<64x34xf32>
    %32 = arith.maximumf %30, %31 : vector<64x34xf32>
    %cst_19 = arith.constant 0.000000e+00 : f32
    %33 = vector.broadcast %cst_19 : f32 to vector<64x34xf32>
    %34 = arith.maximumf %32, %33 : vector<64x34xf32>
    %cst_20 = arith.constant 0.000000e+00 : f32
    %35 = vector.broadcast %cst_20 : f32 to vector<64x34xf32>
    %36 = arith.select %20, %35, %34 : vector<64x34xi1>, vector<64x34xf32>
    %37 = vector.extract_strided_slice %36 {offsets = [0, 1], sizes = [48, 32], strides = [1, 1]} : vector<64x34xf32> to vector<48x32xf32>
    %cst_21 = arith.constant dense<0.000000e+00> : vector<16x32xf32>
    %38 = tpu.matmul %3, %37, %cst_21 {dimension_numbers = #tpu.dot_dimension_numbers<[1], [0], [0], [1], [0, 0, 1, 1], [], []>} : vector<16x48xf32>, vector<48x32xf32>, vector<16x32xf32> -> vector<16x32xf32>
    %39 = vector.extract_strided_slice %36 {offsets = [32, 0], sizes = [32, 32], strides = [1, 1]} : vector<64x34xf32> to vector<32x32xf32>
    %cst_22 = arith.constant dense<0.000000e+00> : vector<16x32xf32>
    %40 = tpu.matmul %4, %39, %cst_22 {dimension_numbers = #tpu.dot_dimension_numbers<[1], [0], [0], [1], [0, 0, 1, 1], [], []>} : vector<16x32xf32>, vector<32x32xf32>, vector<16x32xf32> -> vector<16x32xf32>
    %41 = arith.addf %38, %40 : vector<16x32xf32>
    %42 = vector.broadcast %7 : vector<16x1xf32> to vector<16x32xf32>
    %43 = arith.addf %41, %42 : vector<16x32xf32>
    %44 = vector.extract_strided_slice %36 {offsets = [0, 1], sizes = [64, 32], strides = [1, 1]} : vector<64x34xf32> to vector<64x32xf32>
    %cst_23 = arith.constant dense<0.000000e+00> : vector<16x32xf32>
    %45 = tpu.matmul %5, %44, %cst_23 {dimension_numbers = #tpu.dot_dimension_numbers<[1], [0], [0], [1], [0, 0, 1, 1], [], []>} : vector<16x64xf32>, vector<64x32xf32>, vector<16x32xf32> -> vector<16x32xf32>
    %46 = vector.extract_strided_slice %36 {offsets = [0, 2], sizes = [16, 32], strides = [1, 1]} : vector<64x34xf32> to vector<16x32xf32>
    %cst_24 = arith.constant dense<0.000000e+00> : vector<16x32xf32>
    %47 = tpu.matmul %6, %46, %cst_24 {dimension_numbers = #tpu.dot_dimension_numbers<[1], [0], [0], [1], [0, 0, 1, 1], [], []>} : vector<16x16xf32>, vector<16x32xf32>, vector<16x32xf32> -> vector<16x32xf32>
    %48 = arith.addf %45, %47 : vector<16x32xf32>
    %49 = vector.broadcast %7 : vector<16x1xf32> to vector<16x32xf32>
    %50 = arith.addf %48, %49 : vector<16x32xf32>
    %51 = arith.maximumf %43, %50 : vector<16x32xf32>
    %cst_25 = arith.constant 0.000000e+00 : f32
    %52 = vector.broadcast %cst_25 : f32 to vector<16x32xf32>
    %53 = arith.maximumf %51, %52 : vector<16x32xf32>
    %54 = vector.extract_strided_slice %53 {offsets = [0, 0], sizes = [1, 32], strides = [1, 1]} : vector<16x32xf32> to vector<1x32xf32>
    %c0_26 = arith.constant 0 : index
    %c0_27 = arith.constant 0 : index
    %55 = vector.load %arg14[%c0_26, %c0_27] : memref<2x512xf32, #tpu.memory_space<vmem>>, vector<1x32xf32>
    tpu.vector_store %arg14[%c0_26, %c0_27], %54 {strides = array<i32>} : memref<2x512xf32, #tpu.memory_space<vmem>>, vector<1x32xf32>,
    %56 = vector.extract_strided_slice %53 {offsets = [1, 0], sizes = [1, 32], strides = [1, 1]} : vector<16x32xf32> to vector<1x32xf32>
    %c0_28 = arith.constant 0 : index
    %c32 = arith.constant 32 : index
    %57 = vector.load %arg14[%c0_28, %c32] : memref<2x512xf32, #tpu.memory_space<vmem>>, vector<1x32xf32>
    tpu.vector_store %arg14[%c0_28, %c32], %56 {strides = array<i32>} : memref<2x512xf32, #tpu.memory_space<vmem>>, vector<1x32xf32>,
    %58 = vector.extract_strided_slice %53 {offsets = [2, 0], sizes = [1, 32], strides = [1, 1]} : vector<16x32xf32> to vector<1x32xf32>
    %c0_29 = arith.constant 0 : index
    %c64 = arith.constant 64 : index
    %59 = vector.load %arg14[%c0_29, %c64] : memref<2x512xf32, #tpu.memory_space<vmem>>, vector<1x32xf32>
    tpu.vector_store %arg14[%c0_29, %c64], %58 {strides = array<i32>} : memref<2x512xf32, #tpu.memory_space<vmem>>, vector<1x32xf32>,
    %60 = vector.extract_strided_slice %53 {offsets = [3, 0], sizes = [1, 32], strides = [1, 1]} : vector<16x32xf32> to vector<1x32xf32>
    %c0_30 = arith.constant 0 : index
    %c96 = arith.constant 96 : index
    %61 = vector.load %arg14[%c0_30, %c96] : memref<2x512xf32, #tpu.memory_space<vmem>>, vector<1x32xf32>
    tpu.vector_store %arg14[%c0_30, %c96], %60 {strides = array<i32>} : memref<2x512xf32, #tpu.memory_space<vmem>>, vector<1x32xf32>,
    %62 = vector.extract_strided_slice %53 {offsets = [4, 0], sizes = [1, 32], strides = [1, 1]} : vector<16x32xf32> to vector<1x32xf32>
    %c0_31 = arith.constant 0 : index
    %c128 = arith.constant 128 : index
    %63 = vector.load %arg14[%c0_31, %c128] : memref<2x512xf32, #tpu.memory_space<vmem>>, vector<1x32xf32>
    tpu.vector_store %arg14[%c0_31, %c128], %62 {strides = array<i32>} : memref<2x512xf32, #tpu.memory_space<vmem>>, vector<1x32xf32>,
    %64 = vector.extract_strided_slice %53 {offsets = [5, 0], sizes = [1, 32], strides = [1, 1]} : vector<16x32xf32> to vector<1x32xf32>
    %c0_32 = arith.constant 0 : index
    %c160 = arith.constant 160 : index
    %65 = vector.load %arg14[%c0_32, %c160] : memref<2x512xf32, #tpu.memory_space<vmem>>, vector<1x32xf32>
    tpu.vector_store %arg14[%c0_32, %c160], %64 {strides = array<i32>} : memref<2x512xf32, #tpu.memory_space<vmem>>, vector<1x32xf32>,
    %66 = vector.extract_strided_slice %53 {offsets = [6, 0], sizes = [1, 32], strides = [1, 1]} : vector<16x32xf32> to vector<1x32xf32>
    %c0_33 = arith.constant 0 : index
    %c192 = arith.constant 192 : index
    %67 = vector.load %arg14[%c0_33, %c192] : memref<2x512xf32, #tpu.memory_space<vmem>>, vector<1x32xf32>
    tpu.vector_store %arg14[%c0_33, %c192], %66 {strides = array<i32>} : memref<2x512xf32, #tpu.memory_space<vmem>>, vector<1x32xf32>,
    %68 = vector.extract_strided_slice %53 {offsets = [7, 0], sizes = [1, 32], strides = [1, 1]} : vector<16x32xf32> to vector<1x32xf32>
    %c0_34 = arith.constant 0 : index
    %c224 = arith.constant 224 : index
    %69 = vector.load %arg14[%c0_34, %c224] : memref<2x512xf32, #tpu.memory_space<vmem>>, vector<1x32xf32>
    tpu.vector_store %arg14[%c0_34, %c224], %68 {strides = array<i32>} : memref<2x512xf32, #tpu.memory_space<vmem>>, vector<1x32xf32>,
    %70 = vector.extract_strided_slice %53 {offsets = [8, 0], sizes = [1, 32], strides = [1, 1]} : vector<16x32xf32> to vector<1x32xf32>
    %c0_35 = arith.constant 0 : index
    %c256 = arith.constant 256 : index
    %71 = vector.load %arg14[%c0_35, %c256] : memref<2x512xf32, #tpu.memory_space<vmem>>, vector<1x32xf32>
    tpu.vector_store %arg14[%c0_35, %c256], %70 {strides = array<i32>} : memref<2x512xf32, #tpu.memory_space<vmem>>, vector<1x32xf32>,
    %72 = vector.extract_strided_slice %53 {offsets = [9, 0], sizes = [1, 32], strides = [1, 1]} : vector<16x32xf32> to vector<1x32xf32>
    %c0_36 = arith.constant 0 : index
    %c288 = arith.constant 288 : index
    %73 = vector.load %arg14[%c0_36, %c288] : memref<2x512xf32, #tpu.memory_space<vmem>>, vector<1x32xf32>
    tpu.vector_store %arg14[%c0_36, %c288], %72 {strides = array<i32>} : memref<2x512xf32, #tpu.memory_space<vmem>>, vector<1x32xf32>,
    %74 = vector.extract_strided_slice %53 {offsets = [10, 0], sizes = [1, 32], strides = [1, 1]} : vector<16x32xf32> to vector<1x32xf32>
    %c0_37 = arith.constant 0 : index
    %c320 = arith.constant 320 : index
    %75 = vector.load %arg14[%c0_37, %c320] : memref<2x512xf32, #tpu.memory_space<vmem>>, vector<1x32xf32>
    tpu.vector_store %arg14[%c0_37, %c320], %74 {strides = array<i32>} : memref<2x512xf32, #tpu.memory_space<vmem>>, vector<1x32xf32>,
    %76 = vector.extract_strided_slice %53 {offsets = [11, 0], sizes = [1, 32], strides = [1, 1]} : vector<16x32xf32> to vector<1x32xf32>
    %c0_38 = arith.constant 0 : index
    %c352 = arith.constant 352 : index
    %77 = vector.load %arg14[%c0_38, %c352] : memref<2x512xf32, #tpu.memory_space<vmem>>, vector<1x32xf32>
    tpu.vector_store %arg14[%c0_38, %c352], %76 {strides = array<i32>} : memref<2x512xf32, #tpu.memory_space<vmem>>, vector<1x32xf32>,
    %78 = vector.extract_strided_slice %53 {offsets = [12, 0], sizes = [1, 32], strides = [1, 1]} : vector<16x32xf32> to vector<1x32xf32>
    %c0_39 = arith.constant 0 : index
    %c384 = arith.constant 384 : index
    %79 = vector.load %arg14[%c0_39, %c384] : memref<2x512xf32, #tpu.memory_space<vmem>>, vector<1x32xf32>
    tpu.vector_store %arg14[%c0_39, %c384], %78 {strides = array<i32>} : memref<2x512xf32, #tpu.memory_space<vmem>>, vector<1x32xf32>,
    %80 = vector.extract_strided_slice %53 {offsets = [13, 0], sizes = [1, 32], strides = [1, 1]} : vector<16x32xf32> to vector<1x32xf32>
    %c0_40 = arith.constant 0 : index
    %c416 = arith.constant 416 : index
    %81 = vector.load %arg14[%c0_40, %c416] : memref<2x512xf32, #tpu.memory_space<vmem>>, vector<1x32xf32>
    tpu.vector_store %arg14[%c0_40, %c416], %80 {strides = array<i32>} : memref<2x512xf32, #tpu.memory_space<vmem>>, vector<1x32xf32>,
    %82 = vector.extract_strided_slice %53 {offsets = [14, 0], sizes = [1, 32], strides = [1, 1]} : vector<16x32xf32> to vector<1x32xf32>
    %c0_41 = arith.constant 0 : index
    %c448 = arith.constant 448 : index
    %83 = vector.load %arg14[%c0_41, %c448] : memref<2x512xf32, #tpu.memory_space<vmem>>, vector<1x32xf32>
    tpu.vector_store %arg14[%c0_41, %c448], %82 {strides = array<i32>} : memref<2x512xf32, #tpu.memory_space<vmem>>, vector<1x32xf32>,
    %84 = vector.extract_strided_slice %53 {offsets = [15, 0], sizes = [1, 32], strides = [1, 1]} : vector<16x32xf32> to vector<1x32xf32>
    %c0_42 = arith.constant 0 : index
    %c480 = arith.constant 480 : index
    %85 = vector.load %arg14[%c0_42, %c480] : memref<2x512xf32, #tpu.memory_space<vmem>>, vector<1x32xf32>
    tpu.vector_store %arg14[%c0_42, %c480], %84 {strides = array<i32>} : memref<2x512xf32, #tpu.memory_space<vmem>>, vector<1x32xf32>,
    %c1 = arith.constant 1 : index
    %c0_43 = arith.constant 0 : index
    %c0_44 = arith.constant 0 : index
    %86 = vector.load %arg0[%c1, %c0_43, %c0_44] : memref<2x32x35xf32, #tpu.memory_space<vmem>>, vector<1x32x35xf32>
    %87 = vector.shape_cast %86 : vector<1x32x35xf32> to vector<32x35xf32>
    %88 = vector.extract_strided_slice %87 {offsets = [0, 0], sizes = [32, 34], strides = [1, 1]} : vector<32x35xf32> to vector<32x34xf32>
    %cst_45 = arith.constant dense<0.000000e+00> : vector<128x34xf32>
    %89 = tpu.matmul %0, %88, %cst_45 {dimension_numbers = #tpu.dot_dimension_numbers<[1], [0], [0], [1], [0, 0, 1, 1], [], []>} : vector<128x32xf32>, vector<32x34xf32>, vector<128x34xf32> -> vector<128x34xf32>
    %90 = vector.extract_strided_slice %87 {offsets = [0, 1], sizes = [32, 34], strides = [1, 1]} : vector<32x35xf32> to vector<32x34xf32>
    %cst_46 = arith.constant dense<0.000000e+00> : vector<128x34xf32>
    %91 = tpu.matmul %1, %90, %cst_46 {dimension_numbers = #tpu.dot_dimension_numbers<[1], [0], [0], [1], [0, 0, 1, 1], [], []>} : vector<128x32xf32>, vector<32x34xf32>, vector<128x34xf32> -> vector<128x34xf32>
    %92 = arith.addf %89, %91 : vector<128x34xf32>
    %93 = vector.broadcast %2 : vector<128x1xf32> to vector<128x34xf32>
    %94 = arith.addf %92, %93 : vector<128x34xf32>
    %95 = vector.extract_strided_slice %94 {offsets = [0, 0], sizes = [64, 34], strides = [1, 1]} : vector<128x34xf32> to vector<64x34xf32>
    %96 = vector.extract_strided_slice %94 {offsets = [64, 0], sizes = [64, 34], strides = [1, 1]} : vector<128x34xf32> to vector<64x34xf32>
    %97 = arith.maximumf %95, %96 : vector<64x34xf32>
    %cst_47 = arith.constant 0.000000e+00 : f32
    %98 = vector.broadcast %cst_47 : f32 to vector<64x34xf32>
    %99 = arith.maximumf %97, %98 : vector<64x34xf32>
    %cst_48 = arith.constant 0.000000e+00 : f32
    %100 = vector.broadcast %cst_48 : f32 to vector<64x34xf32>
    %101 = arith.select %20, %100, %99 : vector<64x34xi1>, vector<64x34xf32>
    %102 = vector.extract_strided_slice %101 {offsets = [0, 1], sizes = [48, 32], strides = [1, 1]} : vector<64x34xf32> to vector<48x32xf32>
    %cst_49 = arith.constant dense<0.000000e+00> : vector<16x32xf32>
    %103 = tpu.matmul %3, %102, %cst_49 {dimension_numbers = #tpu.dot_dimension_numbers<[1], [0], [0], [1], [0, 0, 1, 1], [], []>} : vector<16x48xf32>, vector<48x32xf32>, vector<16x32xf32> -> vector<16x32xf32>
    %104 = vector.extract_strided_slice %101 {offsets = [32, 0], sizes = [32, 32], strides = [1, 1]} : vector<64x34xf32> to vector<32x32xf32>
    %cst_50 = arith.constant dense<0.000000e+00> : vector<16x32xf32>
    %105 = tpu.matmul %4, %104, %cst_50 {dimension_numbers = #tpu.dot_dimension_numbers<[1], [0], [0], [1], [0, 0, 1, 1], [], []>} : vector<16x32xf32>, vector<32x32xf32>, vector<16x32xf32> -> vector<16x32xf32>
    %106 = arith.addf %103, %105 : vector<16x32xf32>
    %107 = vector.broadcast %7 : vector<16x1xf32> to vector<16x32xf32>
    %108 = arith.addf %106, %107 : vector<16x32xf32>
    %109 = vector.extract_strided_slice %101 {offsets = [0, 1], sizes = [64, 32], strides = [1, 1]} : vector<64x34xf32> to vector<64x32xf32>
    %cst_51 = arith.constant dense<0.000000e+00> : vector<16x32xf32>
    %110 = tpu.matmul %5, %109, %cst_51 {dimension_numbers = #tpu.dot_dimension_numbers<[1], [0], [0], [1], [0, 0, 1, 1], [], []>} : vector<16x64xf32>, vector<64x32xf32>, vector<16x32xf32> -> vector<16x32xf32>
    %111 = vector.extract_strided_slice %101 {offsets = [0, 2], sizes = [16, 32], strides = [1, 1]} : vector<64x34xf32> to vector<16x32xf32>
    %cst_52 = arith.constant dense<0.000000e+00> : vector<16x32xf32>
    %112 = tpu.matmul %6, %111, %cst_52 {dimension_numbers = #tpu.dot_dimension_numbers<[1], [0], [0], [1], [0, 0, 1, 1], [], []>} : vector<16x16xf32>, vector<16x32xf32>, vector<16x32xf32> -> vector<16x32xf32>
    %113 = arith.addf %110, %112 : vector<16x32xf32>
    %114 = vector.broadcast %7 : vector<16x1xf32> to vector<16x32xf32>
    %115 = arith.addf %113, %114 : vector<16x32xf32>
    %116 = arith.maximumf %108, %115 : vector<16x32xf32>
    %cst_53 = arith.constant 0.000000e+00 : f32
    %117 = vector.broadcast %cst_53 : f32 to vector<16x32xf32>
    %118 = arith.maximumf %116, %117 : vector<16x32xf32>
    %119 = vector.extract_strided_slice %118 {offsets = [0, 0], sizes = [1, 32], strides = [1, 1]} : vector<16x32xf32> to vector<1x32xf32>
    %c1_54 = arith.constant 1 : index
    %c0_55 = arith.constant 0 : index
    %120 = vector.load %arg14[%c1_54, %c0_55] : memref<2x512xf32, #tpu.memory_space<vmem>>, vector<1x32xf32>
    tpu.vector_store %arg14[%c1_54, %c0_55], %119 {strides = array<i32>} : memref<2x512xf32, #tpu.memory_space<vmem>>, vector<1x32xf32>,
    %121 = vector.extract_strided_slice %118 {offsets = [1, 0], sizes = [1, 32], strides = [1, 1]} : vector<16x32xf32> to vector<1x32xf32>
    %c1_56 = arith.constant 1 : index
    %c32_57 = arith.constant 32 : index
    %122 = vector.load %arg14[%c1_56, %c32_57] : memref<2x512xf32, #tpu.memory_space<vmem>>, vector<1x32xf32>
    tpu.vector_store %arg14[%c1_56, %c32_57], %121 {strides = array<i32>} : memref<2x512xf32, #tpu.memory_space<vmem>>, vector<1x32xf32>,
    %123 = vector.extract_strided_slice %118 {offsets = [2, 0], sizes = [1, 32], strides = [1, 1]} : vector<16x32xf32> to vector<1x32xf32>
    %c1_58 = arith.constant 1 : index
    %c64_59 = arith.constant 64 : index
    %124 = vector.load %arg14[%c1_58, %c64_59] : memref<2x512xf32, #tpu.memory_space<vmem>>, vector<1x32xf32>
    tpu.vector_store %arg14[%c1_58, %c64_59], %123 {strides = array<i32>} : memref<2x512xf32, #tpu.memory_space<vmem>>, vector<1x32xf32>,
    %125 = vector.extract_strided_slice %118 {offsets = [3, 0], sizes = [1, 32], strides = [1, 1]} : vector<16x32xf32> to vector<1x32xf32>
    %c1_60 = arith.constant 1 : index
    %c96_61 = arith.constant 96 : index
    %126 = vector.load %arg14[%c1_60, %c96_61] : memref<2x512xf32, #tpu.memory_space<vmem>>, vector<1x32xf32>
    tpu.vector_store %arg14[%c1_60, %c96_61], %125 {strides = array<i32>} : memref<2x512xf32, #tpu.memory_space<vmem>>, vector<1x32xf32>,
    %127 = vector.extract_strided_slice %118 {offsets = [4, 0], sizes = [1, 32], strides = [1, 1]} : vector<16x32xf32> to vector<1x32xf32>
    %c1_62 = arith.constant 1 : index
    %c128_63 = arith.constant 128 : index
    %128 = vector.load %arg14[%c1_62, %c128_63] : memref<2x512xf32, #tpu.memory_space<vmem>>, vector<1x32xf32>
    tpu.vector_store %arg14[%c1_62, %c128_63], %127 {strides = array<i32>} : memref<2x512xf32, #tpu.memory_space<vmem>>, vector<1x32xf32>,
    %129 = vector.extract_strided_slice %118 {offsets = [5, 0], sizes = [1, 32], strides = [1, 1]} : vector<16x32xf32> to vector<1x32xf32>
    %c1_64 = arith.constant 1 : index
    %c160_65 = arith.constant 160 : index
    %130 = vector.load %arg14[%c1_64, %c160_65] : memref<2x512xf32, #tpu.memory_space<vmem>>, vector<1x32xf32>
    tpu.vector_store %arg14[%c1_64, %c160_65], %129 {strides = array<i32>} : memref<2x512xf32, #tpu.memory_space<vmem>>, vector<1x32xf32>,
    %131 = vector.extract_strided_slice %118 {offsets = [6, 0], sizes = [1, 32], strides = [1, 1]} : vector<16x32xf32> to vector<1x32xf32>
    %c1_66 = arith.constant 1 : index
    %c192_67 = arith.constant 192 : index
    %132 = vector.load %arg14[%c1_66, %c192_67] : memref<2x512xf32, #tpu.memory_space<vmem>>, vector<1x32xf32>
    tpu.vector_store %arg14[%c1_66, %c192_67], %131 {strides = array<i32>} : memref<2x512xf32, #tpu.memory_space<vmem>>, vector<1x32xf32>,
    %133 = vector.extract_strided_slice %118 {offsets = [7, 0], sizes = [1, 32], strides = [1, 1]} : vector<16x32xf32> to vector<1x32xf32>
    %c1_68 = arith.constant 1 : index
    %c224_69 = arith.constant 224 : index
    %134 = vector.load %arg14[%c1_68, %c224_69] : memref<2x512xf32, #tpu.memory_space<vmem>>, vector<1x32xf32>
    tpu.vector_store %arg14[%c1_68, %c224_69], %133 {strides = array<i32>} : memref<2x512xf32, #tpu.memory_space<vmem>>, vector<1x32xf32>,
    %135 = vector.extract_strided_slice %118 {offsets = [8, 0], sizes = [1, 32], strides = [1, 1]} : vector<16x32xf32> to vector<1x32xf32>
    %c1_70 = arith.constant 1 : index
    %c256_71 = arith.constant 256 : index
    %136 = vector.load %arg14[%c1_70, %c256_71] : memref<2x512xf32, #tpu.memory_space<vmem>>, vector<1x32xf32>
    tpu.vector_store %arg14[%c1_70, %c256_71], %135 {strides = array<i32>} : memref<2x512xf32, #tpu.memory_space<vmem>>, vector<1x32xf32>,
    %137 = vector.extract_strided_slice %118 {offsets = [9, 0], sizes = [1, 32], strides = [1, 1]} : vector<16x32xf32> to vector<1x32xf32>
    %c1_72 = arith.constant 1 : index
    %c288_73 = arith.constant 288 : index
    %138 = vector.load %arg14[%c1_72, %c288_73] : memref<2x512xf32, #tpu.memory_space<vmem>>, vector<1x32xf32>
    tpu.vector_store %arg14[%c1_72, %c288_73], %137 {strides = array<i32>} : memref<2x512xf32, #tpu.memory_space<vmem>>, vector<1x32xf32>,
    %139 = vector.extract_strided_slice %118 {offsets = [10, 0], sizes = [1, 32], strides = [1, 1]} : vector<16x32xf32> to vector<1x32xf32>
    %c1_74 = arith.constant 1 : index
    %c320_75 = arith.constant 320 : index
    %140 = vector.load %arg14[%c1_74, %c320_75] : memref<2x512xf32, #tpu.memory_space<vmem>>, vector<1x32xf32>
    tpu.vector_store %arg14[%c1_74, %c320_75], %139 {strides = array<i32>} : memref<2x512xf32, #tpu.memory_space<vmem>>, vector<1x32xf32>,
    %141 = vector.extract_strided_slice %118 {offsets = [11, 0], sizes = [1, 32], strides = [1, 1]} : vector<16x32xf32> to vector<1x32xf32>
    %c1_76 = arith.constant 1 : index
    %c352_77 = arith.constant 352 : index
    %142 = vector.load %arg14[%c1_76, %c352_77] : memref<2x512xf32, #tpu.memory_space<vmem>>, vector<1x32xf32>
    tpu.vector_store %arg14[%c1_76, %c352_77], %141 {strides = array<i32>} : memref<2x512xf32, #tpu.memory_space<vmem>>, vector<1x32xf32>,
    %143 = vector.extract_strided_slice %118 {offsets = [12, 0], sizes = [1, 32], strides = [1, 1]} : vector<16x32xf32> to vector<1x32xf32>
    %c1_78 = arith.constant 1 : index
    %c384_79 = arith.constant 384 : index
    %144 = vector.load %arg14[%c1_78, %c384_79] : memref<2x512xf32, #tpu.memory_space<vmem>>, vector<1x32xf32>
    tpu.vector_store %arg14[%c1_78, %c384_79], %143 {strides = array<i32>} : memref<2x512xf32, #tpu.memory_space<vmem>>, vector<1x32xf32>,
    %145 = vector.extract_strided_slice %118 {offsets = [13, 0], sizes = [1, 32], strides = [1, 1]} : vector<16x32xf32> to vector<1x32xf32>
    %c1_80 = arith.constant 1 : index
    %c416_81 = arith.constant 416 : index
    %146 = vector.load %arg14[%c1_80, %c416_81] : memref<2x512xf32, #tpu.memory_space<vmem>>, vector<1x32xf32>
    tpu.vector_store %arg14[%c1_80, %c416_81], %145 {strides = array<i32>} : memref<2x512xf32, #tpu.memory_space<vmem>>, vector<1x32xf32>,
    %147 = vector.extract_strided_slice %118 {offsets = [14, 0], sizes = [1, 32], strides = [1, 1]} : vector<16x32xf32> to vector<1x32xf32>
    %c1_82 = arith.constant 1 : index
    %c448_83 = arith.constant 448 : index
    %148 = vector.load %arg14[%c1_82, %c448_83] : memref<2x512xf32, #tpu.memory_space<vmem>>, vector<1x32xf32>
    tpu.vector_store %arg14[%c1_82, %c448_83], %147 {strides = array<i32>} : memref<2x512xf32, #tpu.memory_space<vmem>>, vector<1x32xf32>,
    %149 = vector.extract_strided_slice %118 {offsets = [15, 0], sizes = [1, 32], strides = [1, 1]} : vector<16x32xf32> to vector<1x32xf32>
    %c1_84 = arith.constant 1 : index
    %c480_85 = arith.constant 480 : index
    %150 = vector.load %arg14[%c1_84, %c480_85] : memref<2x512xf32, #tpu.memory_space<vmem>>, vector<1x32xf32>
    tpu.vector_store %arg14[%c1_84, %c480_85], %149 {strides = array<i32>} : memref<2x512xf32, #tpu.memory_space<vmem>>, vector<1x32xf32>,
    %c0_86 = arith.constant 0 : index
    %c0_87 = arith.constant 0 : index
    %151 = vector.load %arg14[%c0_86, %c0_87] : memref<2x512xf32, #tpu.memory_space<vmem>>, vector<2x512xf32>
    %c0_88 = arith.constant 0 : index
    %c0_89 = arith.constant 0 : index
    %152 = vector.load %arg9[%c0_88, %c0_89] : memref<512x64xf32, #tpu.memory_space<vmem>>, vector<512x64xf32>
    %cst_90 = arith.constant dense<0.000000e+00> : vector<2x64xf32>
    %153 = tpu.matmul %151, %152, %cst_90 {dimension_numbers = #tpu.dot_dimension_numbers<[1], [0], [0], [1], [0, 0, 1, 1], [], []>} : vector<2x512xf32>, vector<512x64xf32>, vector<2x64xf32> -> vector<2x64xf32>
    %c0_91 = arith.constant 0 : index
    %c0_92 = arith.constant 0 : index
    %154 = vector.load %arg10[%c0_91, %c0_92] : memref<1x64xf32, #tpu.memory_space<vmem>>, vector<1x64xf32>
    %155 = vector.broadcast %154 : vector<1x64xf32> to vector<2x64xf32>
    %156 = arith.addf %153, %155 : vector<2x64xf32>
    %cst_93 = arith.constant 0.000000e+00 : f32
    %157 = vector.broadcast %cst_93 : f32 to vector<2x64xf32>
    %158 = arith.maximumf %156, %157 : vector<2x64xf32>
    %c0_94 = arith.constant 0 : index
    %c0_95 = arith.constant 0 : index
    %159 = vector.load %arg11[%c0_94, %c0_95] : memref<64x10xf32, #tpu.memory_space<vmem>>, vector<64x10xf32>
    %cst_96 = arith.constant dense<0.000000e+00> : vector<2x10xf32>
    %160 = tpu.matmul %158, %159, %cst_96 {dimension_numbers = #tpu.dot_dimension_numbers<[1], [0], [0], [1], [0, 0, 1, 1], [], []>} : vector<2x64xf32>, vector<64x10xf32>, vector<2x10xf32> -> vector<2x10xf32>
    %c0_97 = arith.constant 0 : index
    %c0_98 = arith.constant 0 : index
    %161 = vector.load %arg12[%c0_97, %c0_98] : memref<1x10xf32, #tpu.memory_space<vmem>>, vector<1x10xf32>
    %162 = vector.broadcast %161 : vector<1x10xf32> to vector<2x10xf32>
    %163 = arith.addf %160, %162 : vector<2x10xf32>
    %c0_99 = arith.constant 0 : index
    %c0_100 = arith.constant 0 : index
    %164 = vector.load %arg13[%c0_99, %c0_100] : memref<2x10xf32, #tpu.memory_space<vmem>>, vector<2x10xf32>
    tpu.vector_store %arg13[%c0_99, %c0_100], %163 {strides = array<i32>} : memref<2x10xf32, #tpu.memory_space<vmem>>, vector<2x10xf32>,
    return
  }
}

</mosaic_0001>

<llo_original>
// kernel: conv1d_multi_classifier_forward.1
$region0: #{conv1d_multi_classifier_forward.1}
  #allocation0 [shape = 'u32[]', space=smem, size = 0x4, offset = 0x4, fixed_abs, tag = 'smem constant byte address 0x4 - core index']
  #allocation1 [shape = 'u32[144,128]{1,0:T(1,128)}', space=vmem, size = 0x12000, scoped, tag = 'internal scratch']
  #allocation2 [shape = 'f32[2,512]{1,0:T(2,128)}', space=vmem, size = 0x1000, scoped, tag = 'scratch operand']
  %s0 = inlined_call_operand.vmem [shape: f32[2,32,35], index: 0, kind: input, shape index: {}]
  %s1 = inlined_call_operand.vmem [shape: f32[128,32], index: 1, kind: input, shape index: {}]
  %s2 = inlined_call_operand.vmem [shape: f32[128,32], index: 2, kind: input, shape index: {}]
  %s3 = inlined_call_operand.vmem [shape: f32[128,1], index: 3, kind: input, shape index: {}]
  %s4 = inlined_call_operand.vmem [shape: f32[16,48], index: 4, kind: input, shape index: {}]
  %s5 = inlined_call_operand.vmem [shape: f32[16,32], index: 5, kind: input, shape index: {}]
  %s6 = inlined_call_operand.vmem [shape: f32[16,64], index: 6, kind: input, shape index: {}]
  %s7 = inlined_call_operand.vmem [shape: f32[16,16], index: 7, kind: input, shape index: {}]
  %s8 = inlined_call_operand.vmem [shape: f32[16,1], index: 8, kind: input, shape index: {}]
  %s9 = inlined_call_operand.vmem [shape: f32[512,64], index: 9, kind: input, shape index: {}]
  %s10 = inlined_call_operand.vmem [shape: f32[1,64], index: 10, kind: input, shape index: {}]
  %s11 = inlined_call_operand.vmem [shape: f32[64,10], index: 11, kind: input, shape index: {}]
  %s12 = inlined_call_operand.vmem [shape: f32[1,10], index: 12, kind: input, shape index: {}]
  %s13 = inlined_call_operand.hbm [shape: f32[2,10], index: 13, kind: output, shape index: {}]
  %s14 = sld [smem:[#allocation0]]
  $region62: #{conv1d_multi_classifier_forward.1} parent=0
    _
  %s16 = ssub.s32 1, %s14
  %s17 = scalar_select 0, %s16, %s14
  $region1: #{conv1d_multi_classifier_forward.1} parent=0
    #allocation3 [shape = 'u8[1024]{0}', space=vmem, size = 0x400, scoped, tag = 'output window, operand 0, single buffered']
    #allocation4 [shape = 's32[1]{0}', space=sflag, size = 0x4, scoped, tag = 'scoped memory for conv1d_multi_classifier_forward.1']
    %18 = vsyncpa [#allocation4], 0
    // Predicated region
    $region2: #{conv1d_multi_classifier_forward.1} parent=1 // pred_check
      _
    $region3: #{conv1d_multi_classifier_forward.1} parent=1 // pred_check_branch
      %20 = sbr.rel (0) target = $region5
    $region4: #{conv1d_multi_classifier_forward.1} parent=1 // pred_region
      _
    $region5: #{conv1d_multi_classifier_forward.1} parent=1 // pred_fallthru
      _
    // Predicated region
    $region6: #{conv1d_multi_classifier_forward.1} parent=1 // pred_check
      _
    $region7: #{conv1d_multi_classifier_forward.1} parent=1 // pred_check_branch
      %22 = sbr.rel (0) target = $region9
    $region8: #{conv1d_multi_classifier_forward.1} parent=1 // pred_region
      _
    $region9: #{conv1d_multi_classifier_forward.1} parent=1 // pred_fallthru
      _
    // Predicated region
    $region10: #{conv1d_multi_classifier_forward.1} parent=1 // pred_check
      _
    $region11: #{conv1d_multi_classifier_forward.1} parent=1 // pred_check_branch
      %24 = sbr.rel (0) target = $region13
    $region12: #{conv1d_multi_classifier_forward.1} parent=1 // pred_region
      _
    $region13: #{conv1d_multi_classifier_forward.1} parent=1 // pred_fallthru
      _
    // Predicated region
    $region14: #{conv1d_multi_classifier_forward.1} parent=1 // pred_check
      _
    $region15: #{conv1d_multi_classifier_forward.1} parent=1 // pred_check_branch
      %26 = sbr.rel (0) target = $region17
    $region16: #{conv1d_multi_classifier_forward.1} parent=1 // pred_region
      _
    $region17: #{conv1d_multi_classifier_forward.1} parent=1 // pred_fallthru
      _
    // Predicated region
    $region18: #{conv1d_multi_classifier_forward.1} parent=1 // pred_check
      _
    $region19: #{conv1d_multi_classifier_forward.1} parent=1 // pred_check_branch
      %28 = sbr.rel (0) target = $region21
    $region20: #{conv1d_multi_classifier_forward.1} parent=1 // pred_region
      _
    $region21: #{conv1d_multi_classifier_forward.1} parent=1 // pred_fallthru
      _
    // Predicated region
    $region22: #{conv1d_multi_classifier_forward.1} parent=1 // pred_check
      _
    $region23: #{conv1d_multi_classifier_forward.1} parent=1 // pred_check_branch
      %30 = sbr.rel (0) target = $region25
    $region24: #{conv1d_multi_classifier_forward.1} parent=1 // pred_region
      _
    $region25: #{conv1d_multi_classifier_forward.1} parent=1 // pred_fallthru
      _
    // Predicated region
    $region26: #{conv1d_multi_classifier_forward.1} parent=1 // pred_check
      _
    $region27: #{conv1d_multi_classifier_forward.1} parent=1 // pred_check_branch
      %32 = sbr.rel (0) target = $region29
    $region28: #{conv1d_multi_classifier_forward.1} parent=1 // pred_region
      _
    $region29: #{conv1d_multi_classifier_forward.1} parent=1 // pred_fallthru
      _
    // Predicated region
    $region30: #{conv1d_multi_classifier_forward.1} parent=1 // pred_check
      _
    $region31: #{conv1d_multi_classifier_forward.1} parent=1 // pred_check_branch
      %34 = sbr.rel (0) target = $region33
    $region32: #{conv1d_multi_classifier_forward.1} parent=1 // pred_region
      _
    $region33: #{conv1d_multi_classifier_forward.1} parent=1 // pred_fallthru
      _
    // Predicated region
    $region34: #{conv1d_multi_classifier_forward.1} parent=1 // pred_check
      _
    $region35: #{conv1d_multi_classifier_forward.1} parent=1 // pred_check_branch
      %36 = sbr.rel (0) target = $region37
    $region36: #{conv1d_multi_classifier_forward.1} parent=1 // pred_region
      _
    $region37: #{conv1d_multi_classifier_forward.1} parent=1 // pred_fallthru
      _
    // Predicated region
    $region38: #{conv1d_multi_classifier_forward.1} parent=1 // pred_check
      _
    $region39: #{conv1d_multi_classifier_forward.1} parent=1 // pred_check_branch
      %38 = sbr.rel (0) target = $region41
    $region40: #{conv1d_multi_classifier_forward.1} parent=1 // pred_region
      _
    $region41: #{conv1d_multi_classifier_forward.1} parent=1 // pred_fallthru
      _
    // Predicated region
    $region42: #{conv1d_multi_classifier_forward.1} parent=1 // pred_check
      _
    $region43: #{conv1d_multi_classifier_forward.1} parent=1 // pred_check_branch
      %40 = sbr.rel (0) target = $region45
    $region44: #{conv1d_multi_classifier_forward.1} parent=1 // pred_region
      _
    $region45: #{conv1d_multi_classifier_forward.1} parent=1 // pred_fallthru
      _
    // Predicated region
    $region46: #{conv1d_multi_classifier_forward.1} parent=1 // pred_check
      _
    $region47: #{conv1d_multi_classifier_forward.1} parent=1 // pred_check_branch
      %42 = sbr.rel (0) target = $region49
    $region48: #{conv1d_multi_classifier_forward.1} parent=1 // pred_region
      _
    $region49: #{conv1d_multi_classifier_forward.1} parent=1 // pred_fallthru
      _
    // Predicated region
    $region50: #{conv1d_multi_classifier_forward.1} parent=1 // pred_check
      _
    $region51: #{conv1d_multi_classifier_forward.1} parent=1 // pred_check_branch
      %44 = sbr.rel (0) target = $region53
    $region52: #{conv1d_multi_classifier_forward.1} parent=1 // pred_region
      _
    $region53: #{conv1d_multi_classifier_forward.1} parent=1 // pred_fallthru
      _
    %v45 = vld [vmem:[%s1] sm:$0xff]
    %v46 = vld [vmem:[%s1 + $0x8] sm:$0xff]
    %v47 = vld [vmem:[%s1 + $0x10] sm:$0xff]
    %v48 = vld [vmem:[%s1 + $0x18] sm:$0xff]
    %v49 = vld [vmem:[%s1 + $0x20] sm:$0xff]
    %v50 = vld [vmem:[%s1 + $0x28] sm:$0xff]
    %v51 = vld [vmem:[%s1 + $0x30] sm:$0xff]
    %v52 = vld [vmem:[%s1 + $0x38] sm:$0xff]
    %v53 = vld [vmem:[%s1 + $0x40] sm:$0xff]
    %v54 = vld [vmem:[%s1 + $0x48] sm:$0xff]
    %v55 = vld [vmem:[%s1 + $0x50] sm:$0xff]
    %v56 = vld [vmem:[%s1 + $0x58] sm:$0xff]
    %v57 = vld [vmem:[%s1 + $0x60] sm:$0xff]
    %v58 = vld [vmem:[%s1 + $0x68] sm:$0xff]
    %v59 = vld [vmem:[%s1 + $0x70] sm:$0xff]
    %v60 = vld [vmem:[%s1 + $0x78] sm:$0xff]
    %v61 = vld [vmem:[%s2] sm:$0xff]
    %v62 = vld [vmem:[%s2 + $0x8] sm:$0xff]
    %v63 = vld [vmem:[%s2 + $0x10] sm:$0xff]
    %v64 = vld [vmem:[%s2 + $0x18] sm:$0xff]
    %v65 = vld [vmem:[%s2 + $0x20] sm:$0xff]
    %v66 = vld [vmem:[%s2 + $0x28] sm:$0xff]
    %v67 = vld [vmem:[%s2 + $0x30] sm:$0xff]
    %v68 = vld [vmem:[%s2 + $0x38] sm:$0xff]
    %v69 = vld [vmem:[%s2 + $0x40] sm:$0xff]
    %v70 = vld [vmem:[%s2 + $0x48] sm:$0xff]
    %v71 = vld [vmem:[%s2 + $0x50] sm:$0xff]
    %v72 = vld [vmem:[%s2 + $0x58] sm:$0xff]
    %v73 = vld [vmem:[%s2 + $0x60] sm:$0xff]
    %v74 = vld [vmem:[%s2 + $0x68] sm:$0xff]
    %v75 = vld [vmem:[%s2 + $0x70] sm:$0xff]
    %v76 = vld [vmem:[%s2 + $0x78] sm:$0xff]
    %v77 = vld [vmem:[%s3] sm:$0xff]
    %v78 = vld [vmem:[%s3 + $0x8] sm:$0xff]
    %v79 = vld [vmem:[%s3 + $0x10] sm:$0xff]
    %v80 = vld [vmem:[%s3 + $0x18] sm:$0xff]
    %v81 = vld [vmem:[%s3 + $0x20] sm:$0xff]
    %v82 = vld [vmem:[%s3 + $0x28] sm:$0xff]
    %v83 = vld [vmem:[%s3 + $0x30] sm:$0xff]
    %v84 = vld [vmem:[%s3 + $0x38] sm:$0xff]
    %v85 = vld [vmem:[%s3 + $0x40] sm:$0xff]
    %v86 = vld [vmem:[%s3 + $0x48] sm:$0xff]
    %v87 = vld [vmem:[%s3 + $0x50] sm:$0xff]
    %v88 = vld [vmem:[%s3 + $0x58] sm:$0xff]
    %v89 = vld [vmem:[%s3 + $0x60] sm:$0xff]
    %v90 = vld [vmem:[%s3 + $0x68] sm:$0xff]
    %v91 = vld [vmem:[%s3 + $0x70] sm:$0xff]
    %v92 = vld [vmem:[%s3 + $0x78] sm:$0xff]
    %v93 = vld [vmem:[%s4] sm:$0xff]
    %v94 = vld [vmem:[%s4 + $0x8] sm:$0xff]
    %v95 = vld [vmem:[%s5] sm:$0xff]
    %v96 = vld [vmem:[%s5 + $0x8] sm:$0xff]
    %v97 = vld [vmem:[%s6] sm:$0xff]
    %v98 = vld [vmem:[%s6 + $0x8] sm:$0xff]
    %v99 = vld [vmem:[%s7] sm:$0xff]
    %v100 = vld [vmem:[%s7 + $0x8] sm:$0xff]
    %v101 = vld [vmem:[%s8] sm:$0xff]
    %v102 = vld [vmem:[%s8 + $0x8] sm:$0xff]
    %v103 = vlaneseq
    %v104 = vshrl.u32 %v103, 7
    %v105 = vadd.s32 %v104, 8
    %v106 = vadd.s32 %v104, 16
    %v107 = vadd.s32 %v104, 24
    %v108 = vadd.s32 %v104, 32
    %v109 = vadd.s32 %v104, 40
    %v110 = vadd.s32 %v104, 48
    %v111 = vadd.s32 %v104, 56
    %v112 = vlaneseq
    %v113 = vand.u32 %v112, 127
    %vm114 = vcmp.eq.s32.totalorder %v113, 0
    %vm115 = vcmp.eq.s32.totalorder %v113, 33
    %vm116 = vmor %vm114, %vm115
    %vm117 = vcmp.eq.s32.totalorder %v113, 32
    %vm118 = vcmp.ge.s32.totalorder %v104, 48
    %vm119 = vcmp.ge.s32.totalorder %v105, 48
    %vm120 = vcmp.ge.s32.totalorder %v106, 48
    %vm121 = vcmp.ge.s32.totalorder %v107, 48
    %vm122 = vcmp.ge.s32.totalorder %v108, 48
    %vm123 = vcmp.ge.s32.totalorder %v109, 48
    %vm124 = vcmp.ge.s32.totalorder %v110, 48
    %vm125 = vcmp.ge.s32.totalorder %v111, 48
    %vm126 = vmand %vm117, %vm118
    %vm127 = vmand %vm117, %vm119
    %vm128 = vmand %vm117, %vm120
    %vm129 = vmand %vm117, %vm121
    %vm130 = vmand %vm117, %vm122
    %vm131 = vmand %vm117, %vm123
    %vm132 = vmand %vm117, %vm124
    %vm133 = vmand %vm117, %vm125
    %vm134 = vmor %vm116, %vm126
    %vm135 = vmor %vm116, %vm127
    %vm136 = vmor %vm116, %vm128
    %vm137 = vmor %vm116, %vm129
    %vm138 = vmor %vm116, %vm130
    %vm139 = vmor %vm116, %vm131
    %vm140 = vmor %vm116, %vm132
    %vm141 = vmor %vm116, %vm133
    %v142 = vld [vmem:[%s0] sm:$0xff]
    %v143 = vld [vmem:[%s0 + $0x8] sm:$0xff]
    %v144 = vld [vmem:[%s0 + $0x10] sm:$0xff]
    %v145 = vld [vmem:[%s0 + $0x18] sm:$0xff]
    %150 = vrot.lane.b32.xlu0 %v142, 127
    %v151 = vpop.permute.xlu0 %150
    %152 = vrot.lane.b32.xlu0 %v143, 127
    %v153 = vpop.permute.xlu0 %152
    %154 = vrot.lane.b32.xlu0 %v144, 127
    %v155 = vpop.permute.xlu0 %154
    %156 = vrot.lane.b32.xlu0 %v145, 127
    %v157 = vpop.permute.xlu0 %156
    %vm162 = vcmask 261120
    %v164 = vsel %vm162, %v61, 0
    %v167 = vsel %vm162, %v62, 0
    %v170 = vsel %vm162, %v63, 0
    %v173 = vsel %vm162, %v64, 0
    %v176 = vsel %vm162, %v65, 0
    %v179 = vsel %vm162, %v66, 0
    %v182 = vsel %vm162, %v67, 0
    %v185 = vsel %vm162, %v68, 0
    %v188 = vsel %vm162, %v69, 0
    %v191 = vsel %vm162, %v70, 0
    %v194 = vsel %vm162, %v71, 0
    %v197 = vsel %vm162, %v72, 0
    %v200 = vsel %vm162, %v73, 0
    %v203 = vsel %vm162, %v74, 0
    %v206 = vsel %vm162, %v75, 0
    %v209 = vsel %vm162, %v76, 0
    %211 = vmatprep.subr.mxu0 0.0
    %212 = vmatpush1.msra.mxu0 %v151
    %213 = vmatprep.subr.mxu0 0.0
    %214 = vmatpush1.msra.mxu0 %v153
    %215 = vmatprep.subr.mxu0 0.0
    %216 = vmatpush1.msra.mxu0 %v155
    %217 = vmatprep.subr.mxu0 0.0
    %218 = vmatpush1.msra.mxu0 %v157
    %219 = vmatprep.subr.mxu0 0.0
    %220 = vmatpush1.msra.mxu0 0.0
    %221 = vmatprep.subr.mxu0 0.0
    %222 = vmatpush1.msra.mxu0 0.0
    %223 = vmatprep.subr.mxu0 0.0
    %224 = vmatpush1.msra.mxu0 0.0
    %225 = vmatprep.subr.mxu0 0.0
    %226 = vmatpush1.msra.mxu0 0.0
    %227 = vmatprep.subr.mxu0 0.0
    %228 = vmatpush1.msra.mxu0 0.0
    %229 = vmatprep.subr.mxu0 0.0
    %230 = vmatpush1.msra.mxu0 0.0
    %231 = vmatprep.subr.mxu0 0.0
    %232 = vmatpush1.msra.mxu0 0.0
    %233 = vmatprep.subr.mxu0 0.0
    %234 = vmatpush1.msra.mxu0 0.0
    %235 = vmatprep.subr.mxu0 0.0
    %236 = vmatpush1.msra.mxu0 0.0
    %237 = vmatprep.subr.mxu0 0.0
    %238 = vmatpush1.msra.mxu0 0.0
    %239 = vmatprep.subr.mxu0 0.0
    %240 = vmatpush1.msra.mxu0 0.0
    %241 = vmatprep.subr.mxu0 0.0
    %242 = vmatpush1.msra.mxu0 0.0
    %243 = vmatprep.subr.mxu0 0.0
    %244 = vmatpush1.msra.mxu0 0.0
    %245 = vmatprep.subr.mxu0 0.0
    %246 = vmatpush1.msra.mxu0 0.0
    %247 = vmatprep.subr.mxu0 0.0
    %248 = vmatpush1.msra.mxu0 0.0
    %249 = vmatprep.subr.mxu0 0.0
    %250 = vmatpush1.msra.mxu0 0.0
    %251 = vmatprep.subr.mxu0 0.0
    %252 = vmatpush1.msra.mxu0 0.0
    %253 = vmatprep.subr.mxu0 0.0
    %254 = vmatpush1.msra.mxu0 0.0
    %255 = vmatprep.subr.mxu0 0.0
    %256 = vmatpush1.msra.mxu0 0.0
    %257 = vmatprep.subr.mxu0 0.0
    %258 = vmatpush1.msra.mxu0 0.0
    %259 = vmatprep.subr.mxu0 0.0
    %260 = vmatpush1.msra.mxu0 0.0
    %261 = vmatprep.subr.mxu0 0.0
    %262 = vmatpush1.msra.mxu0 0.0
    %263 = vmatprep.subr.mxu0 0.0
    %264 = vmatpush1.msra.mxu0 0.0
    %265 = vmatprep.subr.mxu0 0.0
    %266 = vmatpush1.msra.mxu0 0.0
    %267 = vmatprep.subr.mxu0 0.0
    %268 = vmatpush1.msra.mxu0 0.0
    %269 = vmatprep.subr.mxu0 0.0
    %270 = vmatpush1.msra.mxu0 0.0
    %271 = vmatprep.subr.mxu0 0.0
    %272 = vmatpush1.msra.mxu0 0.0
    %273 = vmatprep.subr.mxu0 0.0
    %274 = vmatpush1.msra.mxu0 0.0
    %275 = vmatprep.mubr.f32.mxu0 0.0
    %276 = vmatmul.mubr.f32.gmra.mrb[0].mxu0 %v164
    %v277 = vpop.f32.mrb[0].mxu0
    %v278 = vadd.f32 0.0, %v277
    %v279 = vpop.f32.mrb[0].mxu0
    %280 = vmatprep.mubr.f32.mxu0 0.0
    %281 = vmatmul.mubr.f32.gmra.mrb[0].mxu0 %v167
    %v282 = vpop.f32.mrb[0].mxu0
    %v283 = vadd.f32 0.0, %v282
    %v284 = vpop.f32.mrb[0].mxu0
    %285 = vmatprep.mubr.f32.mxu0 0.0
    %286 = vmatmul.mubr.f32.gmra.mrb[0].mxu0 %v170
    %v287 = vpop.f32.mrb[0].mxu0
    %v288 = vadd.f32 0.0, %v287
    %v289 = vpop.f32.mrb[0].mxu0
    %290 = vmatprep.mubr.f32.mxu0 0.0
    %291 = vmatmul.mubr.f32.gmra.mrb[0].mxu0 %v173
    %v292 = vpop.f32.mrb[0].mxu0
    %v293 = vadd.f32 0.0, %v292
    %v294 = vpop.f32.mrb[0].mxu0
    %295 = vmatprep.mubr.f32.mxu0 0.0
    %296 = vmatmul.mubr.f32.gmra.mrb[0].mxu0 %v176
    %v297 = vpop.f32.mrb[0].mxu0
    %v298 = vadd.f32 0.0, %v297
    %v299 = vpop.f32.mrb[0].mxu0
    %300 = vmatprep.mubr.f32.mxu0 0.0
    %301 = vmatmul.mubr.f32.gmra.mrb[0].mxu0 %v179
    %v302 = vpop.f32.mrb[0].mxu0
    %v303 = vadd.f32 0.0, %v302
    %v304 = vpop.f32.mrb[0].mxu0
    %305 = vmatprep.mubr.f32.mxu0 0.0
    %306 = vmatmul.mubr.f32.gmra.mrb[0].mxu0 %v182
    %v307 = vpop.f32.mrb[0].mxu0
    %v308 = vadd.f32 0.0, %v307
    %v309 = vpop.f32.mrb[0].mxu0
    %310 = vmatprep.mubr.f32.mxu0 0.0
    %311 = vmatmul.mubr.f32.gmra.mrb[0].mxu0 %v185
    %v312 = vpop.f32.mrb[0].mxu0
    %v313 = vadd.f32 0.0, %v312
    %v314 = vpop.f32.mrb[0].mxu0
    %315 = vmatprep.mubr.f32.mxu0 0.0
    %316 = vmatmul.mubr.f32.gmra.mrb[0].mxu0 %v188
    %v317 = vpop.f32.mrb[0].mxu0
    %v318 = vadd.f32 0.0, %v317
    %v319 = vpop.f32.mrb[0].mxu0
    %320 = vmatprep.mubr.f32.mxu0 0.0
    %321 = vmatmul.mubr.f32.gmra.mrb[0].mxu0 %v191
    %v322 = vpop.f32.mrb[0].mxu0
    %v323 = vadd.f32 0.0, %v322
    %v324 = vpop.f32.mrb[0].mxu0
    %325 = vmatprep.mubr.f32.mxu0 0.0
    %326 = vmatmul.mubr.f32.gmra.mrb[0].mxu0 %v194
    %v327 = vpop.f32.mrb[0].mxu0
    %v328 = vadd.f32 0.0, %v327
    %v329 = vpop.f32.mrb[0].mxu0
    %330 = vmatprep.mubr.f32.mxu0 0.0
    %331 = vmatmul.mubr.f32.gmra.mrb[0].mxu0 %v197
    %v332 = vpop.f32.mrb[0].mxu0
    %v333 = vadd.f32 0.0, %v332
    %v334 = vpop.f32.mrb[0].mxu0
    %335 = vmatprep.mubr.f32.mxu0 0.0
    %336 = vmatmul.mubr.f32.gmra.mrb[0].mxu0 %v200
    %v337 = vpop.f32.mrb[0].mxu0
    %v338 = vadd.f32 0.0, %v337
    %v339 = vpop.f32.mrb[0].mxu0
    %340 = vmatprep.mubr.f32.mxu0 0.0
    %341 = vmatmul.mubr.f32.gmra.mrb[0].mxu0 %v203
    %v342 = vpop.f32.mrb[0].mxu0
    %v343 = vadd.f32 0.0, %v342
    %v344 = vpop.f32.mrb[0].mxu0
    %345 = vmatprep.mubr.f32.mxu0 0.0
    %346 = vmatmul.mubr.f32.gmra.mrb[0].mxu0 %v206
    %v347 = vpop.f32.mrb[0].mxu0
    %v348 = vadd.f32 0.0, %v347
    %v349 = vpop.f32.mrb[0].mxu0
    %350 = vmatprep.mubr.f32.mxu0 0.0
    %351 = vmatmul.mubr.f32.gmra.mrb[0].mxu0 %v209
    %v352 = vpop.f32.mrb[0].mxu0
    %v353 = vadd.f32 0.0, %v352
    %v354 = vpop.f32.mrb[0].mxu0
    %355 = vdwg.mxu0
    %v357 = vsel %vm162, %v45, 0
    %v360 = vsel %vm162, %v46, 0
    %v363 = vsel %vm162, %v47, 0
    %v366 = vsel %vm162, %v48, 0
    %v369 = vsel %vm162, %v49, 0
    %v372 = vsel %vm162, %v50, 0
    %v375 = vsel %vm162, %v51, 0
    %v378 = vsel %vm162, %v52, 0
    %v381 = vsel %vm162, %v53, 0
    %v384 = vsel %vm162, %v54, 0
    %v387 = vsel %vm162, %v55, 0
    %v390 = vsel %vm162, %v56, 0
    %v393 = vsel %vm162, %v57, 0
    %v396 = vsel %vm162, %v58, 0
    %v399 = vsel %vm162, %v59, 0
    %v402 = vsel %vm162, %v60, 0
    %404 = vmatprep.subr.mxu0 0.0
    %405 = vmatpush1.msra.mxu0 %v142
    %406 = vmatprep.subr.mxu0 0.0
    %407 = vmatpush1.msra.mxu0 %v143
    %408 = vmatprep.subr.mxu0 0.0
    %409 = vmatpush1.msra.mxu0 %v144
    %410 = vmatprep.subr.mxu0 0.0
    %411 = vmatpush1.msra.mxu0 %v145
    %412 = vmatprep.subr.mxu0 0.0
    %413 = vmatpush1.msra.mxu0 0.0
    %414 = vmatprep.subr.mxu0 0.0
    %415 = vmatpush1.msra.mxu0 0.0
    %416 = vmatprep.subr.mxu0 0.0
    %417 = vmatpush1.msra.mxu0 0.0
    %418 = vmatprep.subr.mxu0 0.0
    %419 = vmatpush1.msra.mxu0 0.0
    %420 = vmatprep.subr.mxu0 0.0
    %421 = vmatpush1.msra.mxu0 0.0
    %422 = vmatprep.subr.mxu0 0.0
    %423 = vmatpush1.msra.mxu0 0.0
    %424 = vmatprep.subr.mxu0 0.0
    %425 = vmatpush1.msra.mxu0 0.0
    %426 = vmatprep.subr.mxu0 0.0
    %427 = vmatpush1.msra.mxu0 0.0
    %428 = vmatprep.subr.mxu0 0.0
    %429 = vmatpush1.msra.mxu0 0.0
    %430 = vmatprep.subr.mxu0 0.0
    %431 = vmatpush1.msra.mxu0 0.0
    %432 = vmatprep.subr.mxu0 0.0
    %433 = vmatpush1.msra.mxu0 0.0
    %434 = vmatprep.subr.mxu0 0.0
    %435 = vmatpush1.msra.mxu0 0.0
    %436 = vmatprep.subr.mxu0 0.0
    %437 = vmatpush1.msra.mxu0 0.0
    %438 = vmatprep.subr.mxu0 0.0
    %439 = vmatpush1.msra.mxu0 0.0
    %440 = vmatprep.subr.mxu0 0.0
    %441 = vmatpush1.msra.mxu0 0.0
    %442 = vmatprep.subr.mxu0 0.0
    %443 = vmatpush1.msra.mxu0 0.0
    %444 = vmatprep.subr.mxu0 0.0
    %445 = vmatpush1.msra.mxu0 0.0
    %446 = vmatprep.subr.mxu0 0.0
    %447 = vmatpush1.msra.mxu0 0.0
    %448 = vmatprep.subr.mxu0 0.0
    %449 = vmatpush1.msra.mxu0 0.0
    %450 = vmatprep.subr.mxu0 0.0
    %451 = vmatpush1.msra.mxu0 0.0
    %452 = vmatprep.subr.mxu0 0.0
    %453 = vmatpush1.msra.mxu0 0.0
    %454 = vmatprep.subr.mxu0 0.0
    %455 = vmatpush1.msra.mxu0 0.0
    %456 = vmatprep.subr.mxu0 0.0
    %457 = vmatpush1.msra.mxu0 0.0
    %458 = vmatprep.subr.mxu0 0.0
    %459 = vmatpush1.msra.mxu0 0.0
    %460 = vmatprep.subr.mxu0 0.0
    %461 = vmatpush1.msra.mxu0 0.0
    %462 = vmatprep.subr.mxu0 0.0
    %463 = vmatpush1.msra.mxu0 0.0
    %464 = vmatprep.subr.mxu0 0.0
    %465 = vmatpush1.msra.mxu0 0.0
    %466 = vmatprep.subr.mxu0 0.0
    %467 = vmatpush1.msra.mxu0 0.0
    %468 = vmatprep.mubr.f32.mxu0 0.0
    %469 = vmatmul.mubr.f32.gmra.mrb[0].mxu0 %v357
    %v470 = vpop.f32.mrb[0].mxu0
    %v471 = vadd.f32 %v278, %v470
    %v472 = vpop.f32.mrb[0].mxu0
    %473 = vmatprep.mubr.f32.mxu0 0.0
    %474 = vmatmul.mubr.f32.gmra.mrb[0].mxu0 %v360
    %v475 = vpop.f32.mrb[0].mxu0
    %v476 = vadd.f32 %v283, %v475
    %v477 = vpop.f32.mrb[0].mxu0
    %478 = vmatprep.mubr.f32.mxu0 0.0
    %479 = vmatmul.mubr.f32.gmra.mrb[0].mxu0 %v363
    %v480 = vpop.f32.mrb[0].mxu0
    %v481 = vadd.f32 %v288, %v480
    %v482 = vpop.f32.mrb[0].mxu0
    %483 = vmatprep.mubr.f32.mxu0 0.0
    %484 = vmatmul.mubr.f32.gmra.mrb[0].mxu0 %v366
    %v485 = vpop.f32.mrb[0].mxu0
    %v486 = vadd.f32 %v293, %v485
    %v487 = vpop.f32.mrb[0].mxu0
    %488 = vmatprep.mubr.f32.mxu0 0.0
    %489 = vmatmul.mubr.f32.gmra.mrb[0].mxu0 %v369
    %v490 = vpop.f32.mrb[0].mxu0
    %v491 = vadd.f32 %v298, %v490
    %v492 = vpop.f32.mrb[0].mxu0
    %493 = vmatprep.mubr.f32.mxu0 0.0
    %494 = vmatmul.mubr.f32.gmra.mrb[0].mxu0 %v372
    %v495 = vpop.f32.mrb[0].mxu0
    %v496 = vadd.f32 %v303, %v495
    %v497 = vpop.f32.mrb[0].mxu0
    %498 = vmatprep.mubr.f32.mxu0 0.0
    %499 = vmatmul.mubr.f32.gmra.mrb[0].mxu0 %v375
    %v500 = vpop.f32.mrb[0].mxu0
    %v501 = vadd.f32 %v308, %v500
    %v502 = vpop.f32.mrb[0].mxu0
    %503 = vmatprep.mubr.f32.mxu0 0.0
    %504 = vmatmul.mubr.f32.gmra.mrb[0].mxu0 %v378
    %v505 = vpop.f32.mrb[0].mxu0
    %v506 = vadd.f32 %v313, %v505
    %v507 = vpop.f32.mrb[0].mxu0
    %508 = vmatprep.mubr.f32.mxu0 0.0
    %509 = vmatmul.mubr.f32.gmra.mrb[0].mxu0 %v381
    %v510 = vpop.f32.mrb[0].mxu0
    %v511 = vadd.f32 %v318, %v510
    %v512 = vpop.f32.mrb[0].mxu0
    %513 = vmatprep.mubr.f32.mxu0 0.0
    %514 = vmatmul.mubr.f32.gmra.mrb[0].mxu0 %v384
    %v515 = vpop.f32.mrb[0].mxu0
    %v516 = vadd.f32 %v323, %v515
    %v517 = vpop.f32.mrb[0].mxu0
    %518 = vmatprep.mubr.f32.mxu0 0.0
    %519 = vmatmul.mubr.f32.gmra.mrb[0].mxu0 %v387
    %v520 = vpop.f32.mrb[0].mxu0
    %v521 = vadd.f32 %v328, %v520
    %v522 = vpop.f32.mrb[0].mxu0
    %523 = vmatprep.mubr.f32.mxu0 0.0
    %524 = vmatmul.mubr.f32.gmra.mrb[0].mxu0 %v390
    %v525 = vpop.f32.mrb[0].mxu0
    %v526 = vadd.f32 %v333, %v525
    %v527 = vpop.f32.mrb[0].mxu0
    %528 = vmatprep.mubr.f32.mxu0 0.0
    %529 = vmatmul.mubr.f32.gmra.mrb[0].mxu0 %v393
    %v530 = vpop.f32.mrb[0].mxu0
    %v531 = vadd.f32 %v338, %v530
    %v532 = vpop.f32.mrb[0].mxu0
    %533 = vmatprep.mubr.f32.mxu0 0.0
    %534 = vmatmul.mubr.f32.gmra.mrb[0].mxu0 %v396
    %v535 = vpop.f32.mrb[0].mxu0
    %v536 = vadd.f32 %v343, %v535
    %v537 = vpop.f32.mrb[0].mxu0
    %538 = vmatprep.mubr.f32.mxu0 0.0
    %539 = vmatmul.mubr.f32.gmra.mrb[0].mxu0 %v399
    %v540 = vpop.f32.mrb[0].mxu0
    %v541 = vadd.f32 %v348, %v540
    %v542 = vpop.f32.mrb[0].mxu0
    %543 = vmatprep.mubr.f32.mxu0 0.0
    %544 = vmatmul.mubr.f32.gmra.mrb[0].mxu0 %v402
    %v545 = vpop.f32.mrb[0].mxu0
    %v546 = vadd.f32 %v353, %v545
    %v547 = vpop.f32.mrb[0].mxu0
    %548 = vdwg.mxu0
    %550 = vset.pattern.permute.xlu0 0
    %551 = vperm.xlu0 %550, %v77
    %v552 = vpop.permute.xlu0 %551
    %555 = vset.pattern.permute.xlu0 0
    %556 = vperm.xlu0 %555, %v78
    %v557 = vpop.permute.xlu0 %556
    %560 = vset.pattern.permute.xlu0 0
    %561 = vperm.xlu0 %560, %v79
    %v562 = vpop.permute.xlu0 %561
    %565 = vset.pattern.permute.xlu0 0
    %566 = vperm.xlu0 %565, %v80
    %v567 = vpop.permute.xlu0 %566
    %570 = vset.pattern.permute.xlu0 0
    %571 = vperm.xlu0 %570, %v81
    %v572 = vpop.permute.xlu0 %571
    %575 = vset.pattern.permute.xlu0 0
    %576 = vperm.xlu0 %575, %v82
    %v577 = vpop.permute.xlu0 %576
    %580 = vset.pattern.permute.xlu0 0
    %581 = vperm.xlu0 %580, %v83
    %v582 = vpop.permute.xlu0 %581
    %585 = vset.pattern.permute.xlu0 0
    %586 = vperm.xlu0 %585, %v84
    %v587 = vpop.permute.xlu0 %586
    %590 = vset.pattern.permute.xlu0 0
    %591 = vperm.xlu0 %590, %v85
    %v592 = vpop.permute.xlu0 %591
    %595 = vset.pattern.permute.xlu0 0
    %596 = vperm.xlu0 %595, %v86
    %v597 = vpop.permute.xlu0 %596
    %600 = vset.pattern.permute.xlu0 0
    %601 = vperm.xlu0 %600, %v87
    %v602 = vpop.permute.xlu0 %601
    %605 = vset.pattern.permute.xlu0 0
    %606 = vperm.xlu0 %605, %v88
    %v607 = vpop.permute.xlu0 %606
    %610 = vset.pattern.permute.xlu0 0
    %611 = vperm.xlu0 %610, %v89
    %v612 = vpop.permute.xlu0 %611
    %615 = vset.pattern.permute.xlu0 0
    %616 = vperm.xlu0 %615, %v90
    %v617 = vpop.permute.xlu0 %616
    %620 = vset.pattern.permute.xlu0 0
    %621 = vperm.xlu0 %620, %v91
    %v622 = vpop.permute.xlu0 %621
    %625 = vset.pattern.permute.xlu0 0
    %626 = vperm.xlu0 %625, %v92
    %v627 = vpop.permute.xlu0 %626
    %v629 = vadd.f32 %v471, %v552
    %v630 = vadd.f32 %v476, %v557
    %v631 = vadd.f32 %v481, %v562
    %v632 = vadd.f32 %v486, %v567
    %v633 = vadd.f32 %v491, %v572
    %v634 = vadd.f32 %v496, %v577
    %v635 = vadd.f32 %v501, %v582
    %v636 = vadd.f32 %v506, %v587
    %v637 = vadd.f32 %v511, %v592
    %v638 = vadd.f32 %v516, %v597
    %v639 = vadd.f32 %v521, %v602
    %v640 = vadd.f32 %v526, %v607
    %v641 = vadd.f32 %v531, %v612
    %v642 = vadd.f32 %v536, %v617
    %v643 = vadd.f32 %v541, %v622
    %v644 = vadd.f32 %v546, %v627
    %v645 = vmax.f32 %v629, %v637
    %v646 = vmax.f32 %v630, %v638
    %v647 = vmax.f32 %v631, %v639
    %v648 = vmax.f32 %v632, %v640
    %v649 = vmax.f32 %v633, %v641
    %v650 = vmax.f32 %v634, %v642
    %v651 = vmax.f32 %v635, %v643
    %v652 = vmax.f32 %v636, %v644
    %v653 = vmax.f32 %v645, 0.0
    %v654 = vmax.f32 %v646, 0.0
    %v655 = vmax.f32 %v647, 0.0
    %v656 = vmax.f32 %v648, 0.0
    %v657 = vmax.f32 %v649, 0.0
    %v658 = vmax.f32 %v650, 0.0
    %v659 = vmax.f32 %v651, 0.0
    %v660 = vmax.f32 %v652, 0.0
    %v661 = vsel %vm134, 0.0, %v653
    %v662 = vsel %vm135, 0.0, %v654
    %v663 = vsel %vm136, 0.0, %v655
    %v664 = vsel %vm137, 0.0, %v656
    %v665 = vsel %vm138, 0.0, %v657
    %v666 = vsel %vm139, 0.0, %v658
    %v667 = vsel %vm140, 0.0, %v659
    %v668 = vsel %vm141, 0.0, %v660
    %v670 = vsel %vm162, %v95, 0
    %v673 = vsel %vm162, %v96, 0
    %675 = vmatprep.subr.mxu0 0.0
    %676 = vmatpush1.msra.mxu0 %v665
    %677 = vmatprep.subr.mxu0 0.0
    %678 = vmatpush1.msra.mxu0 %v666
    %679 = vmatprep.subr.mxu0 0.0
    %680 = vmatpush1.msra.mxu0 %v667
    %681 = vmatprep.subr.mxu0 0.0
    %682 = vmatpush1.msra.mxu0 %v668
    %683 = vmatprep.subr.mxu0 0.0
    %684 = vmatpush1.msra.mxu0 0.0
    %685 = vmatprep.subr.mxu0 0.0
    %686 = vmatpush1.msra.mxu0 0.0
    %687 = vmatprep.subr.mxu0 0.0
    %688 = vmatpush1.msra.mxu0 0.0
    %689 = vmatprep.subr.mxu0 0.0
    %690 = vmatpush1.msra.mxu0 0.0
    %691 = vmatprep.subr.mxu0 0.0
    %692 = vmatpush1.msra.mxu0 0.0
    %693 = vmatprep.subr.mxu0 0.0
    %694 = vmatpush1.msra.mxu0 0.0
    %695 = vmatprep.subr.mxu0 0.0
    %696 = vmatpush1.msra.mxu0 0.0
    %697 = vmatprep.subr.mxu0 0.0
    %698 = vmatpush1.msra.mxu0 0.0
    %699 = vmatprep.subr.mxu0 0.0
    %700 = vmatpush1.msra.mxu0 0.0
    %701 = vmatprep.subr.mxu0 0.0
    %702 = vmatpush1.msra.mxu0 0.0
    %703 = vmatprep.subr.mxu0 0.0
    %704 = vmatpush1.msra.mxu0 0.0
    %705 = vmatprep.subr.mxu0 0.0
    %706 = vmatpush1.msra.mxu0 0.0
    %707 = vmatprep.subr.mxu0 0.0
    %708 = vmatpush1.msra.mxu0 0.0
    %709 = vmatprep.subr.mxu0 0.0
    %710 = vmatpush1.msra.mxu0 0.0
    %711 = vmatprep.subr.mxu0 0.0
    %712 = vmatpush1.msra.mxu0 0.0
    %713 = vmatprep.subr.mxu0 0.0
    %714 = vmatpush1.msra.mxu0 0.0
    %715 = vmatprep.subr.mxu0 0.0
    %716 = vmatpush1.msra.mxu0 0.0
    %717 = vmatprep.subr.mxu0 0.0
    %718 = vmatpush1.msra.mxu0 0.0
    %719 = vmatprep.subr.mxu0 0.0
    %720 = vmatpush1.msra.mxu0 0.0
    %721 = vmatprep.subr.mxu0 0.0
    %722 = vmatpush1.msra.mxu0 0.0
    %723 = vmatprep.subr.mxu0 0.0
    %724 = vmatpush1.msra.mxu0 0.0
    %725 = vmatprep.subr.mxu0 0.0
    %726 = vmatpush1.msra.mxu0 0.0
    %727 = vmatprep.subr.mxu0 0.0
    %728 = vmatpush1.msra.mxu0 0.0
    %729 = vmatprep.subr.mxu0 0.0
    %730 = vmatpush1.msra.mxu0 0.0
    %731 = vmatprep.subr.mxu0 0.0
    %732 = vmatpush1.msra.mxu0 0.0
    %733 = vmatprep.subr.mxu0 0.0
    %734 = vmatpush1.msra.mxu0 0.0
    %735 = vmatprep.subr.mxu0 0.0
    %736 = vmatpush1.msra.mxu0 0.0
    %737 = vmatprep.subr.mxu0 0.0
    %738 = vmatpush1.msra.mxu0 0.0
    %739 = vmatprep.mubr.f32.mxu0 0.0
    %740 = vmatmul.mubr.f32.gmra.mrb[0].mxu0 %v670
    %v741 = vpop.f32.mrb[0].mxu0
    %v742 = vadd.f32 0.0, %v741
    %v743 = vpop.f32.mrb[0].mxu0
    %744 = vmatprep.mubr.f32.mxu0 0.0
    %745 = vmatmul.mubr.f32.gmra.mrb[0].mxu0 %v673
    %v746 = vpop.f32.mrb[0].mxu0
    %v747 = vadd.f32 0.0, %v746
    %v748 = vpop.f32.mrb[0].mxu0
    %749 = vdwg.mxu0
    %756 = vrot.lane.b32.xlu0 %v661, 127
    %v757 = vpop.permute.xlu0 %756
    %758 = vrot.lane.b32.xlu0 %v662, 127
    %v759 = vpop.permute.xlu0 %758
    %760 = vrot.lane.b32.xlu0 %v663, 127
    %v761 = vpop.permute.xlu0 %760
    %762 = vrot.lane.b32.xlu0 %v664, 127
    %v763 = vpop.permute.xlu0 %762
    %764 = vrot.lane.b32.xlu0 %v665, 127
    %v765 = vpop.permute.xlu0 %764
    %766 = vrot.lane.b32.xlu0 %v666, 127
    %v767 = vpop.permute.xlu0 %766
    %vm774 = vcmask 392192
    %v776 = vsel %vm774, %v93, 0
    %v779 = vsel %vm774, %v94, 0
    %781 = vmatprep.subr.mxu0 0.0
    %782 = vmatpush1.msra.mxu0 %v757
    %783 = vmatprep.subr.mxu0 0.0
    %784 = vmatpush1.msra.mxu0 %v759
    %785 = vmatprep.subr.mxu0 0.0
    %786 = vmatpush1.msra.mxu0 %v761
    %787 = vmatprep.subr.mxu0 0.0
    %788 = vmatpush1.msra.mxu0 %v763
    %789 = vmatprep.subr.mxu0 0.0
    %790 = vmatpush1.msra.mxu0 %v765
    %791 = vmatprep.subr.mxu0 0.0
    %792 = vmatpush1.msra.mxu0 %v767
    %793 = vmatprep.subr.mxu0 0.0
    %794 = vmatpush1.msra.mxu0 0.0
    %795 = vmatprep.subr.mxu0 0.0
    %796 = vmatpush1.msra.mxu0 0.0
    %797 = vmatprep.subr.mxu0 0.0
    %798 = vmatpush1.msra.mxu0 0.0
    %799 = vmatprep.subr.mxu0 0.0
    %800 = vmatpush1.msra.mxu0 0.0
    %801 = vmatprep.subr.mxu0 0.0
    %802 = vmatpush1.msra.mxu0 0.0
    %803 = vmatprep.subr.mxu0 0.0
    %804 = vmatpush1.msra.mxu0 0.0
    %805 = vmatprep.subr.mxu0 0.0
    %806 = vmatpush1.msra.mxu0 0.0
    %807 = vmatprep.subr.mxu0 0.0
    %808 = vmatpush1.msra.mxu0 0.0
    %809 = vmatprep.subr.mxu0 0.0
    %810 = vmatpush1.msra.mxu0 0.0
    %811 = vmatprep.subr.mxu0 0.0
    %812 = vmatpush1.msra.mxu0 0.0
    %813 = vmatprep.subr.mxu0 0.0
    %814 = vmatpush1.msra.mxu0 0.0
    %815 = vmatprep.subr.mxu0 0.0
    %816 = vmatpush1.msra.mxu0 0.0
    %817 = vmatprep.subr.mxu0 0.0
    %818 = vmatpush1.msra.mxu0 0.0
    %819 = vmatprep.subr.mxu0 0.0
    %820 = vmatpush1.msra.mxu0 0.0
    %821 = vmatprep.subr.mxu0 0.0
    %822 = vmatpush1.msra.mxu0 0.0
    %823 = vmatprep.subr.mxu0 0.0
    %824 = vmatpush1.msra.mxu0 0.0
    %825 = vmatprep.subr.mxu0 0.0
    %826 = vmatpush1.msra.mxu0 0.0
    %827 = vmatprep.subr.mxu0 0.0
    %828 = vmatpush1.msra.mxu0 0.0
    %829 = vmatprep.subr.mxu0 0.0
    %830 = vmatpush1.msra.mxu0 0.0
    %831 = vmatprep.subr.mxu0 0.0
    %832 = vmatpush1.msra.mxu0 0.0
    %833 = vmatprep.subr.mxu0 0.0
    %834 = vmatpush1.msra.mxu0 0.0
    %835 = vmatprep.subr.mxu0 0.0
    %836 = vmatpush1.msra.mxu0 0.0
    %837 = vmatprep.subr.mxu0 0.0
    %838 = vmatpush1.msra.mxu0 0.0
    %839 = vmatprep.subr.mxu0 0.0
    %840 = vmatpush1.msra.mxu0 0.0
    %841 = vmatprep.subr.mxu0 0.0
    %842 = vmatpush1.msra.mxu0 0.0
    %843 = vmatprep.subr.mxu0 0.0
    %844 = vmatpush1.msra.mxu0 0.0
    %845 = vmatprep.mubr.f32.mxu0 0.0
    %846 = vmatmul.mubr.f32.gmra.mrb[0].mxu0 %v776
    %v847 = vpop.f32.mrb[0].mxu0
    %v848 = vadd.f32 %v742, %v847
    %v849 = vpop.f32.mrb[0].mxu0
    %850 = vmatprep.mubr.f32.mxu0 0.0
    %851 = vmatmul.mubr.f32.gmra.mrb[0].mxu0 %v779
    %v852 = vpop.f32.mrb[0].mxu0
    %v853 = vadd.f32 %v747, %v852
    %v854 = vpop.f32.mrb[0].mxu0
    %855 = vdwg.mxu0
    %857 = vset.pattern.permute.xlu0 0
    %858 = vperm.xlu0 %857, %v101
    %v859 = vpop.permute.xlu0 %858
    %862 = vset.pattern.permute.xlu0 0
    %863 = vperm.xlu0 %862, %v102
    %v864 = vpop.permute.xlu0 %863
    %v866 = vadd.f32 %v848, %v859
    %v867 = vadd.f32 %v853, %v864
    %868 = vrot.lane.b32.xlu0 %v661, 126
    %v869 = vpop.permute.xlu0 %868
    %870 = vrot.lane.b32.xlu0 %v662, 126
    %v871 = vpop.permute.xlu0 %870
    %vm874 = vcmask 130048
    %v876 = vsel %vm874, %v99, 0
    %v879 = vsel %vm874, %v100, 0
    %881 = vmatprep.subr.mxu0 0.0
    %882 = vmatpush1.msra.mxu0 %v869
    %883 = vmatprep.subr.mxu0 0.0
    %884 = vmatpush1.msra.mxu0 %v871
    %885 = vmatprep.subr.mxu0 0.0
    %886 = vmatpush1.msra.mxu0 0.0
    %887 = vmatprep.subr.mxu0 0.0
    %888 = vmatpush1.msra.mxu0 0.0
    %889 = vmatprep.subr.mxu0 0.0
    %890 = vmatpush1.msra.mxu0 0.0
    %891 = vmatprep.subr.mxu0 0.0
    %892 = vmatpush1.msra.mxu0 0.0
    %893 = vmatprep.subr.mxu0 0.0
    %894 = vmatpush1.msra.mxu0 0.0
    %895 = vmatprep.subr.mxu0 0.0
    %896 = vmatpush1.msra.mxu0 0.0
    %897 = vmatprep.subr.mxu0 0.0
    %898 = vmatpush1.msra.mxu0 0.0
    %899 = vmatprep.subr.mxu0 0.0
    %900 = vmatpush1.msra.mxu0 0.0
    %901 = vmatprep.subr.mxu0 0.0
    %902 = vmatpush1.msra.mxu0 0.0
    %903 = vmatprep.subr.mxu0 0.0
    %904 = vmatpush1.msra.mxu0 0.0
    %905 = vmatprep.subr.mxu0 0.0
    %906 = vmatpush1.msra.mxu0 0.0
    %907 = vmatprep.subr.mxu0 0.0
    %908 = vmatpush1.msra.mxu0 0.0
    %909 = vmatprep.subr.mxu0 0.0
    %910 = vmatpush1.msra.mxu0 0.0
    %911 = vmatprep.subr.mxu0 0.0
    %912 = vmatpush1.msra.mxu0 0.0
    %913 = vmatprep.subr.mxu0 0.0
    %914 = vmatpush1.msra.mxu0 0.0
    %915 = vmatprep.subr.mxu0 0.0
    %916 = vmatpush1.msra.mxu0 0.0
    %917 = vmatprep.subr.mxu0 0.0
    %918 = vmatpush1.msra.mxu0 0.0
    %919 = vmatprep.subr.mxu0 0.0
    %920 = vmatpush1.msra.mxu0 0.0
    %921 = vmatprep.subr.mxu0 0.0
    %922 = vmatpush1.msra.mxu0 0.0
    %923 = vmatprep.subr.mxu0 0.0
    %924 = vmatpush1.msra.mxu0 0.0
    %925 = vmatprep.subr.mxu0 0.0
    %926 = vmatpush1.msra.mxu0 0.0
    %927 = vmatprep.subr.mxu0 0.0
    %928 = vmatpush1.msra.mxu0 0.0
    %929 = vmatprep.subr.mxu0 0.0
    %930 = vmatpush1.msra.mxu0 0.0
    %931 = vmatprep.subr.mxu0 0.0
    %932 = vmatpush1.msra.mxu0 0.0
    %933 = vmatprep.subr.mxu0 0.0
    %934 = vmatpush1.msra.mxu0 0.0
    %935 = vmatprep.subr.mxu0 0.0
    %936 = vmatpush1.msra.mxu0 0.0
    %937 = vmatprep.subr.mxu0 0.0
    %938 = vmatpush1.msra.mxu0 0.0
    %939 = vmatprep.subr.mxu0 0.0
    %940 = vmatpush1.msra.mxu0 0.0
    %941 = vmatprep.subr.mxu0 0.0
    %942 = vmatpush1.msra.mxu0 0.0
    %943 = vmatprep.subr.mxu0 0.0
    %944 = vmatpush1.msra.mxu0 0.0
    %945 = vmatprep.mubr.f32.mxu0 0.0
    %946 = vmatmul.mubr.f32.gmra.mrb[0].mxu0 %v876
    %v947 = vpop.f32.mrb[0].mxu0
    %v948 = vadd.f32 0.0, %v947
    %v949 = vpop.f32.mrb[0].mxu0
    %950 = vmatprep.mubr.f32.mxu0 0.0
    %951 = vmatmul.mubr.f32.gmra.mrb[0].mxu0 %v879
    %v952 = vpop.f32.mrb[0].mxu0
    %v953 = vadd.f32 0.0, %v952
    %v954 = vpop.f32.mrb[0].mxu0
    %955 = vdwg.mxu0
    %958 = vrot.lane.b32.xlu0 %v667, 127
    %v959 = vpop.permute.xlu0 %958
    %960 = vrot.lane.b32.xlu0 %v668, 127
    %v961 = vpop.permute.xlu0 %960
    %vm964 = vcmask 523264
    %v966 = vsel %vm964, %v97, 0
    %v969 = vsel %vm964, %v98, 0
    %971 = vmatprep.subr.mxu0 0.0
    %972 = vmatpush1.msra.mxu0 %v757
    %973 = vmatprep.subr.mxu0 0.0
    %974 = vmatpush1.msra.mxu0 %v759
    %975 = vmatprep.subr.mxu0 0.0
    %976 = vmatpush1.msra.mxu0 %v761
    %977 = vmatprep.subr.mxu0 0.0
    %978 = vmatpush1.msra.mxu0 %v763
    %979 = vmatprep.subr.mxu0 0.0
    %980 = vmatpush1.msra.mxu0 %v765
    %981 = vmatprep.subr.mxu0 0.0
    %982 = vmatpush1.msra.mxu0 %v767
    %983 = vmatprep.subr.mxu0 0.0
    %984 = vmatpush1.msra.mxu0 %v959
    %985 = vmatprep.subr.mxu0 0.0
    %986 = vmatpush1.msra.mxu0 %v961
    %987 = vmatprep.subr.mxu0 0.0
    %988 = vmatpush1.msra.mxu0 0.0
    %989 = vmatprep.subr.mxu0 0.0
    %990 = vmatpush1.msra.mxu0 0.0
    %991 = vmatprep.subr.mxu0 0.0
    %992 = vmatpush1.msra.mxu0 0.0
    %993 = vmatprep.subr.mxu0 0.0
    %994 = vmatpush1.msra.mxu0 0.0
    %995 = vmatprep.subr.mxu0 0.0
    %996 = vmatpush1.msra.mxu0 0.0
    %997 = vmatprep.subr.mxu0 0.0
    %998 = vmatpush1.msra.mxu0 0.0
    %999 = vmatprep.subr.mxu0 0.0
    %1000 = vmatpush1.msra.mxu0 0.0
    %1001 = vmatprep.subr.mxu0 0.0
    %1002 = vmatpush1.msra.mxu0 0.0
    %1003 = vmatprep.subr.mxu0 0.0
    %1004 = vmatpush1.msra.mxu0 0.0
    %1005 = vmatprep.subr.mxu0 0.0
    %1006 = vmatpush1.msra.mxu0 0.0
    %1007 = vmatprep.subr.mxu0 0.0
    %1008 = vmatpush1.msra.mxu0 0.0
    %1009 = vmatprep.subr.mxu0 0.0
    %1010 = vmatpush1.msra.mxu0 0.0
    %1011 = vmatprep.subr.mxu0 0.0
    %1012 = vmatpush1.msra.mxu0 0.0
    %1013 = vmatprep.subr.mxu0 0.0
    %1014 = vmatpush1.msra.mxu0 0.0
    %1015 = vmatprep.subr.mxu0 0.0
    %1016 = vmatpush1.msra.mxu0 0.0
    %1017 = vmatprep.subr.mxu0 0.0
    %1018 = vmatpush1.msra.mxu0 0.0
    %1019 = vmatprep.subr.mxu0 0.0
    %1020 = vmatpush1.msra.mxu0 0.0
    %1021 = vmatprep.subr.mxu0 0.0
    %1022 = vmatpush1.msra.mxu0 0.0
    %1023 = vmatprep.subr.mxu0 0.0
    %1024 = vmatpush1.msra.mxu0 0.0
    %1025 = vmatprep.subr.mxu0 0.0
    %1026 = vmatpush1.msra.mxu0 0.0
    %1027 = vmatprep.subr.mxu0 0.0
    %1028 = vmatpush1.msra.mxu0 0.0
    %1029 = vmatprep.subr.mxu0 0.0
    %1030 = vmatpush1.msra.mxu0 0.0
    %1031 = vmatprep.subr.mxu0 0.0
    %1032 = vmatpush1.msra.mxu0 0.0
    %1033 = vmatprep.subr.mxu0 0.0
    %1034 = vmatpush1.msra.mxu0 0.0
    %1035 = vmatprep.mubr.f32.mxu0 0.0
    %1036 = vmatmul.mubr.f32.gmra.mrb[0].mxu0 %v966
    %v1037 = vpop.f32.mrb[0].mxu0
    %v1038 = vadd.f32 %v948, %v1037
    %v1039 = vpop.f32.mrb[0].mxu0
    %1040 = vmatprep.mubr.f32.mxu0 0.0
    %1041 = vmatmul.mubr.f32.gmra.mrb[0].mxu0 %v969
    %v1042 = vpop.f32.mrb[0].mxu0
    %v1043 = vadd.f32 %v953, %v1042
    %v1044 = vpop.f32.mrb[0].mxu0
    %1045 = vdwg.mxu0
    %v1046 = vadd.f32 %v1038, %v859
    %v1047 = vadd.f32 %v1043, %v864
    %v1048 = vmax.f32 %v866, %v1046
    %v1049 = vmax.f32 %v867, %v1047
    %v1050 = vmax.f32 %v1048, 0.0
    %v1051 = vmax.f32 %v1049, 0.0
    %vm1052 = vcmask 253952
    %1053 = vst.msk [vmem:[#allocation2] sm:$0x1] %vm1052, %v1050
    %v1056 = vunpack.c.l.s4 1983009808
    %v1057 = vunpack.c.0.s8 %v1056
    %v1058 = vlaneseq
    %v1059 = vshrl.u32 %v1058, 7
    %v1060 = vsub.s32 %v1057, %v1059
    %v1061 = vrot.slane %v1050, %v1060
    %v1062 = vrot.slane %v1061, 7
    %v1063 = vrot.slane %v1062, 2
    %1064 = vrot.lane.b32.xlu0 %v1063, 32
    %v1065 = vpop.permute.xlu0 %1064
    %vm1067 = vcmask 516352
    %1068 = vst.msk [vmem:[#allocation2] sm:$0x1] %vm1067, %v1065
    %v1069 = vcombine.high %v1061, %v1061
    %1070 = vrot.lane.b32.xlu0 %v1069, 64
    %v1071 = vpop.permute.xlu0 %1070
    %vm1073 = vcmask 778752
    %1074 = vst.msk [vmem:[#allocation2] sm:$0x1] %vm1073, %v1071
    %v1075 = vrot.slane %v1069, 7
    %v1076 = vrot.slane %v1075, 2
    %1077 = vrot.lane.b32.xlu0 %v1076, 96
    %v1078 = vpop.permute.xlu0 %1077
    %vm1080 = vcmask 1041152
    %1081 = vst.msk [vmem:[#allocation2] sm:$0x1] %vm1080, %v1078
    %v1082 = vcombine.high %v1050, %v1050
    %v1084 = vunpack.c.l.s4 1983009808
    %v1085 = vunpack.c.0.s8 %v1084
    %v1086 = vlaneseq
    %v1087 = vshrl.u32 %v1086, 7
    %v1088 = vsub.s32 %v1085, %v1087
    %v1089 = vrot.slane %v1082, %v1088
    %1091 = vst.msk [vmem:[#allocation2 + $0x2] sm:$0x1] %vm1052, %v1089
    %v1092 = vrot.slane %v1089, 7
    %v1093 = vrot.slane %v1092, 2
    %1094 = vrot.lane.b32.xlu0 %v1093, 32
    %v1095 = vpop.permute.xlu0 %1094
    %1097 = vst.msk [vmem:[#allocation2 + $0x2] sm:$0x1] %vm1067, %v1095
    %v1098 = vcombine.high %v1089, %v1089
    %1099 = vrot.lane.b32.xlu0 %v1098, 64
    %v1100 = vpop.permute.xlu0 %1099
    %1102 = vst.msk [vmem:[#allocation2 + $0x2] sm:$0x1] %vm1073, %v1100
    %v1103 = vrot.slane %v1098, 7
    %v1104 = vrot.slane %v1103, 2
    %1105 = vrot.lane.b32.xlu0 %v1104, 96
    %v1106 = vpop.permute.xlu0 %1105
    %1108 = vst.msk [vmem:[#allocation2 + $0x2] sm:$0x1] %vm1080, %v1106
    %1109 = vst.msk [vmem:[#allocation2 + $0x4] sm:$0x1] %vm1052, %v1051
    %v1112 = vunpack.c.l.s4 1983009808
    %v1113 = vunpack.c.0.s8 %v1112
    %v1114 = vlaneseq
    %v1115 = vshrl.u32 %v1114, 7
    %v1116 = vsub.s32 %v1113, %v1115
    %v1117 = vrot.slane %v1051, %v1116
    %v1118 = vrot.slane %v1117, 7
    %v1119 = vrot.slane %v1118, 2
    %1120 = vrot.lane.b32.xlu0 %v1119, 32
    %v1121 = vpop.permute.xlu0 %1120
    %1123 = vst.msk [vmem:[#allocation2 + $0x4] sm:$0x1] %vm1067, %v1121
    %v1124 = vcombine.high %v1117, %v1117
    %1125 = vrot.lane.b32.xlu0 %v1124, 64
    %v1126 = vpop.permute.xlu0 %1125
    %1128 = vst.msk [vmem:[#allocation2 + $0x4] sm:$0x1] %vm1073, %v1126
    %v1129 = vrot.slane %v1124, 7
    %v1130 = vrot.slane %v1129, 2
    %1131 = vrot.lane.b32.xlu0 %v1130, 96
    %v1132 = vpop.permute.xlu0 %1131
    %1134 = vst.msk [vmem:[#allocation2 + $0x4] sm:$0x1] %vm1080, %v1132
    %v1135 = vcombine.high %v1051, %v1051
    %v1137 = vunpack.c.l.s4 1983009808
    %v1138 = vunpack.c.0.s8 %v1137
    %v1139 = vlaneseq
    %v1140 = vshrl.u32 %v1139, 7
    %v1141 = vsub.s32 %v1138, %v1140
    %v1142 = vrot.slane %v1135, %v1141
    %1144 = vst.msk [vmem:[#allocation2 + $0x6] sm:$0x1] %vm1052, %v1142
    %v1145 = vrot.slane %v1142, 7
    %v1146 = vrot.slane %v1145, 2
    %1147 = vrot.lane.b32.xlu0 %v1146, 32
    %v1148 = vpop.permute.xlu0 %1147
    %1150 = vst.msk [vmem:[#allocation2 + $0x6] sm:$0x1] %vm1067, %v1148
    %v1151 = vcombine.high %v1142, %v1142
    %1152 = vrot.lane.b32.xlu0 %v1151, 64
    %v1153 = vpop.permute.xlu0 %1152
    %1155 = vst.msk [vmem:[#allocation2 + $0x6] sm:$0x1] %vm1073, %v1153
    %v1156 = vrot.slane %v1151, 7
    %v1157 = vrot.slane %v1156, 2
    %1158 = vrot.lane.b32.xlu0 %v1157, 96
    %v1159 = vpop.permute.xlu0 %1158
    %1161 = vst.msk [vmem:[#allocation2 + $0x6] sm:$0x1] %vm1080, %v1159
    %s1162 = scalar_lea.vmem %s0, 32
    %v1163 = vld [vmem:[%s1162] sm:$0xff]
    %v1164 = vld [vmem:[%s1162 + $0x8] sm:$0xff]
    %v1165 = vld [vmem:[%s1162 + $0x10] sm:$0xff]
    %v1166 = vld [vmem:[%s1162 + $0x18] sm:$0xff]
    %1171 = vrot.lane.b32.xlu0 %v1163, 127
    %v1172 = vpop.permute.xlu0 %1171
    %1173 = vrot.lane.b32.xlu0 %v1164, 127
    %v1174 = vpop.permute.xlu0 %1173
    %1175 = vrot.lane.b32.xlu0 %v1165, 127
    %v1176 = vpop.permute.xlu0 %1175
    %1177 = vrot.lane.b32.xlu0 %v1166, 127
    %v1178 = vpop.permute.xlu0 %1177
    %1183 = vmatprep.subr.mxu0 0.0
    %1184 = vmatpush1.msra.mxu0 %v1172
    %1185 = vmatprep.subr.mxu0 0.0
    %1186 = vmatpush1.msra.mxu0 %v1174
    %1187 = vmatprep.subr.mxu0 0.0
    %1188 = vmatpush1.msra.mxu0 %v1176
    %1189 = vmatprep.subr.mxu0 0.0
    %1190 = vmatpush1.msra.mxu0 %v1178
    %1191 = vmatprep.subr.mxu0 0.0
    %1192 = vmatpush1.msra.mxu0 0.0
    %1193 = vmatprep.subr.mxu0 0.0
    %1194 = vmatpush1.msra.mxu0 0.0
    %1195 = vmatprep.subr.mxu0 0.0
    %1196 = vmatpush1.msra.mxu0 0.0
    %1197 = vmatprep.subr.mxu0 0.0
    %1198 = vmatpush1.msra.mxu0 0.0
    %1199 = vmatprep.subr.mxu0 0.0
    %1200 = vmatpush1.msra.mxu0 0.0
    %1201 = vmatprep.subr.mxu0 0.0
    %1202 = vmatpush1.msra.mxu0 0.0
    %1203 = vmatprep.subr.mxu0 0.0
    %1204 = vmatpush1.msra.mxu0 0.0
    %1205 = vmatprep.subr.mxu0 0.0
    %1206 = vmatpush1.msra.mxu0 0.0
    %1207 = vmatprep.subr.mxu0 0.0
    %1208 = vmatpush1.msra.mxu0 0.0
    %1209 = vmatprep.subr.mxu0 0.0
    %1210 = vmatpush1.msra.mxu0 0.0
    %1211 = vmatprep.subr.mxu0 0.0
    %1212 = vmatpush1.msra.mxu0 0.0
    %1213 = vmatprep.subr.mxu0 0.0
    %1214 = vmatpush1.msra.mxu0 0.0
    %1215 = vmatprep.subr.mxu0 0.0
    %1216 = vmatpush1.msra.mxu0 0.0
    %1217 = vmatprep.subr.mxu0 0.0
    %1218 = vmatpush1.msra.mxu0 0.0
    %1219 = vmatprep.subr.mxu0 0.0
    %1220 = vmatpush1.msra.mxu0 0.0
    %1221 = vmatprep.subr.mxu0 0.0
    %1222 = vmatpush1.msra.mxu0 0.0
    %1223 = vmatprep.subr.mxu0 0.0
    %1224 = vmatpush1.msra.mxu0 0.0
    %1225 = vmatprep.subr.mxu0 0.0
    %1226 = vmatpush1.msra.mxu0 0.0
    %1227 = vmatprep.subr.mxu0 0.0
    %1228 = vmatpush1.msra.mxu0 0.0
    %1229 = vmatprep.subr.mxu0 0.0
    %1230 = vmatpush1.msra.mxu0 0.0
    %1231 = vmatprep.subr.mxu0 0.0
    %1232 = vmatpush1.msra.mxu0 0.0
    %1233 = vmatprep.subr.mxu0 0.0
    %1234 = vmatpush1.msra.mxu0 0.0
    %1235 = vmatprep.subr.mxu0 0.0
    %1236 = vmatpush1.msra.mxu0 0.0
    %1237 = vmatprep.subr.mxu0 0.0
    %1238 = vmatpush1.msra.mxu0 0.0
    %1239 = vmatprep.subr.mxu0 0.0
    %1240 = vmatpush1.msra.mxu0 0.0
    %1241 = vmatprep.subr.mxu0 0.0
    %1242 = vmatpush1.msra.mxu0 0.0
    %1243 = vmatprep.subr.mxu0 0.0
    %1244 = vmatpush1.msra.mxu0 0.0
    %1245 = vmatprep.subr.mxu0 0.0
    %1246 = vmatpush1.msra.mxu0 0.0
    %1247 = vmatprep.mubr.f32.mxu0 0.0
    %1248 = vmatmul.mubr.f32.gmra.mrb[0].mxu0 %v164
    %v1249 = vpop.f32.mrb[0].mxu0
    %v1250 = vadd.f32 0.0, %v1249
    %v1251 = vpop.f32.mrb[0].mxu0
    %1252 = vmatprep.mubr.f32.mxu0 0.0
    %1253 = vmatmul.mubr.f32.gmra.mrb[0].mxu0 %v167
    %v1254 = vpop.f32.mrb[0].mxu0
    %v1255 = vadd.f32 0.0, %v1254
    %v1256 = vpop.f32.mrb[0].mxu0
    %1257 = vmatprep.mubr.f32.mxu0 0.0
    %1258 = vmatmul.mubr.f32.gmra.mrb[0].mxu0 %v170
    %v1259 = vpop.f32.mrb[0].mxu0
    %v1260 = vadd.f32 0.0, %v1259
    %v1261 = vpop.f32.mrb[0].mxu0
    %1262 = vmatprep.mubr.f32.mxu0 0.0
    %1263 = vmatmul.mubr.f32.gmra.mrb[0].mxu0 %v173
    %v1264 = vpop.f32.mrb[0].mxu0
    %v1265 = vadd.f32 0.0, %v1264
    %v1266 = vpop.f32.mrb[0].mxu0
    %1267 = vmatprep.mubr.f32.mxu0 0.0
    %1268 = vmatmul.mubr.f32.gmra.mrb[0].mxu0 %v176
    %v1269 = vpop.f32.mrb[0].mxu0
    %v1270 = vadd.f32 0.0, %v1269
    %v1271 = vpop.f32.mrb[0].mxu0
    %1272 = vmatprep.mubr.f32.mxu0 0.0
    %1273 = vmatmul.mubr.f32.gmra.mrb[0].mxu0 %v179
    %v1274 = vpop.f32.mrb[0].mxu0
    %v1275 = vadd.f32 0.0, %v1274
    %v1276 = vpop.f32.mrb[0].mxu0
    %1277 = vmatprep.mubr.f32.mxu0 0.0
    %1278 = vmatmul.mubr.f32.gmra.mrb[0].mxu0 %v182
    %v1279 = vpop.f32.mrb[0].mxu0
    %v1280 = vadd.f32 0.0, %v1279
    %v1281 = vpop.f32.mrb[0].mxu0
    %1282 = vmatprep.mubr.f32.mxu0 0.0
    %1283 = vmatmul.mubr.f32.gmra.mrb[0].mxu0 %v185
    %v1284 = vpop.f32.mrb[0].mxu0
    %v1285 = vadd.f32 0.0, %v1284
    %v1286 = vpop.f32.mrb[0].mxu0
    %1287 = vmatprep.mubr.f32.mxu0 0.0
    %1288 = vmatmul.mubr.f32.gmra.mrb[0].mxu0 %v188
    %v1289 = vpop.f32.mrb[0].mxu0
    %v1290 = vadd.f32 0.0, %v1289
    %v1291 = vpop.f32.mrb[0].mxu0
    %1292 = vmatprep.mubr.f32.mxu0 0.0
    %1293 = vmatmul.mubr.f32.gmra.mrb[0].mxu0 %v191
    %v1294 = vpop.f32.mrb[0].mxu0
    %v1295 = vadd.f32 0.0, %v1294
    %v1296 = vpop.f32.mrb[0].mxu0
    %1297 = vmatprep.mubr.f32.mxu0 0.0
    %1298 = vmatmul.mubr.f32.gmra.mrb[0].mxu0 %v194
    %v1299 = vpop.f32.mrb[0].mxu0
    %v1300 = vadd.f32 0.0, %v1299
    %v1301 = vpop.f32.mrb[0].mxu0
    %1302 = vmatprep.mubr.f32.mxu0 0.0
    %1303 = vmatmul.mubr.f32.gmra.mrb[0].mxu0 %v197
    %v1304 = vpop.f32.mrb[0].mxu0
    %v1305 = vadd.f32 0.0, %v1304
    %v1306 = vpop.f32.mrb[0].mxu0
    %1307 = vmatprep.mubr.f32.mxu0 0.0
    %1308 = vmatmul.mubr.f32.gmra.mrb[0].mxu0 %v200
    %v1309 = vpop.f32.mrb[0].mxu0
    %v1310 = vadd.f32 0.0, %v1309
    %v1311 = vpop.f32.mrb[0].mxu0
    %1312 = vmatprep.mubr.f32.mxu0 0.0
    %1313 = vmatmul.mubr.f32.gmra.mrb[0].mxu0 %v203
    %v1314 = vpop.f32.mrb[0].mxu0
    %v1315 = vadd.f32 0.0, %v1314
    %v1316 = vpop.f32.mrb[0].mxu0
    %1317 = vmatprep.mubr.f32.mxu0 0.0
    %1318 = vmatmul.mubr.f32.gmra.mrb[0].mxu0 %v206
    %v1319 = vpop.f32.mrb[0].mxu0
    %v1320 = vadd.f32 0.0, %v1319
    %v1321 = vpop.f32.mrb[0].mxu0
    %1322 = vmatprep.mubr.f32.mxu0 0.0
    %1323 = vmatmul.mubr.f32.gmra.mrb[0].mxu0 %v209
    %v1324 = vpop.f32.mrb[0].mxu0
    %v1325 = vadd.f32 0.0, %v1324
    %v1326 = vpop.f32.mrb[0].mxu0
    %1327 = vdwg.mxu0
    %1328 = vmatprep.subr.mxu0 0.0
    %1329 = vmatpush1.msra.mxu0 %v1163
    %1330 = vmatprep.subr.mxu0 0.0
    %1331 = vmatpush1.msra.mxu0 %v1164
    %1332 = vmatprep.subr.mxu0 0.0
    %1333 = vmatpush1.msra.mxu0 %v1165
    %1334 = vmatprep.subr.mxu0 0.0
    %1335 = vmatpush1.msra.mxu0 %v1166
    %1336 = vmatprep.subr.mxu0 0.0
    %1337 = vmatpush1.msra.mxu0 0.0
    %1338 = vmatprep.subr.mxu0 0.0
    %1339 = vmatpush1.msra.mxu0 0.0
    %1340 = vmatprep.subr.mxu0 0.0
    %1341 = vmatpush1.msra.mxu0 0.0
    %1342 = vmatprep.subr.mxu0 0.0
    %1343 = vmatpush1.msra.mxu0 0.0
    %1344 = vmatprep.subr.mxu0 0.0
    %1345 = vmatpush1.msra.mxu0 0.0
    %1346 = vmatprep.subr.mxu0 0.0
    %1347 = vmatpush1.msra.mxu0 0.0
    %1348 = vmatprep.subr.mxu0 0.0
    %1349 = vmatpush1.msra.mxu0 0.0
    %1350 = vmatprep.subr.mxu0 0.0
    %1351 = vmatpush1.msra.mxu0 0.0
    %1352 = vmatprep.subr.mxu0 0.0
    %1353 = vmatpush1.msra.mxu0 0.0
    %1354 = vmatprep.subr.mxu0 0.0
    %1355 = vmatpush1.msra.mxu0 0.0
    %1356 = vmatprep.subr.mxu0 0.0
    %1357 = vmatpush1.msra.mxu0 0.0
    %1358 = vmatprep.subr.mxu0 0.0
    %1359 = vmatpush1.msra.mxu0 0.0
    %1360 = vmatprep.subr.mxu0 0.0
    %1361 = vmatpush1.msra.mxu0 0.0
    %1362 = vmatprep.subr.mxu0 0.0
    %1363 = vmatpush1.msra.mxu0 0.0
    %1364 = vmatprep.subr.mxu0 0.0
    %1365 = vmatpush1.msra.mxu0 0.0
    %1366 = vmatprep.subr.mxu0 0.0
    %1367 = vmatpush1.msra.mxu0 0.0
    %1368 = vmatprep.subr.mxu0 0.0
    %1369 = vmatpush1.msra.mxu0 0.0
    %1370 = vmatprep.subr.mxu0 0.0
    %1371 = vmatpush1.msra.mxu0 0.0
    %1372 = vmatprep.subr.mxu0 0.0
    %1373 = vmatpush1.msra.mxu0 0.0
    %1374 = vmatprep.subr.mxu0 0.0
    %1375 = vmatpush1.msra.mxu0 0.0
    %1376 = vmatprep.subr.mxu0 0.0
    %1377 = vmatpush1.msra.mxu0 0.0
    %1378 = vmatprep.subr.mxu0 0.0
    %1379 = vmatpush1.msra.mxu0 0.0
    %1380 = vmatprep.subr.mxu0 0.0
    %1381 = vmatpush1.msra.mxu0 0.0
    %1382 = vmatprep.subr.mxu0 0.0
    %1383 = vmatpush1.msra.mxu0 0.0
    %1384 = vmatprep.subr.mxu0 0.0
    %1385 = vmatpush1.msra.mxu0 0.0
    %1386 = vmatprep.subr.mxu0 0.0
    %1387 = vmatpush1.msra.mxu0 0.0
    %1388 = vmatprep.subr.mxu0 0.0
    %1389 = vmatpush1.msra.mxu0 0.0
    %1390 = vmatprep.subr.mxu0 0.0
    %1391 = vmatpush1.msra.mxu0 0.0
    %1392 = vmatprep.mubr.f32.mxu0 0.0
    %1393 = vmatmul.mubr.f32.gmra.mrb[0].mxu0 %v357
    %v1394 = vpop.f32.mrb[0].mxu0
    %v1395 = vadd.f32 %v1250, %v1394
    %v1396 = vpop.f32.mrb[0].mxu0
    %1397 = vmatprep.mubr.f32.mxu0 0.0
    %1398 = vmatmul.mubr.f32.gmra.mrb[0].mxu0 %v360
    %v1399 = vpop.f32.mrb[0].mxu0
    %v1400 = vadd.f32 %v1255, %v1399
    %v1401 = vpop.f32.mrb[0].mxu0
    %1402 = vmatprep.mubr.f32.mxu0 0.0
    %1403 = vmatmul.mubr.f32.gmra.mrb[0].mxu0 %v363
    %v1404 = vpop.f32.mrb[0].mxu0
    %v1405 = vadd.f32 %v1260, %v1404
    %v1406 = vpop.f32.mrb[0].mxu0
    %1407 = vmatprep.mubr.f32.mxu0 0.0
    %1408 = vmatmul.mubr.f32.gmra.mrb[0].mxu0 %v366
    %v1409 = vpop.f32.mrb[0].mxu0
    %v1410 = vadd.f32 %v1265, %v1409
    %v1411 = vpop.f32.mrb[0].mxu0
    %1412 = vmatprep.mubr.f32.mxu0 0.0
    %1413 = vmatmul.mubr.f32.gmra.mrb[0].mxu0 %v369
    %v1414 = vpop.f32.mrb[0].mxu0
    %v1415 = vadd.f32 %v1270, %v1414
    %v1416 = vpop.f32.mrb[0].mxu0
    %1417 = vmatprep.mubr.f32.mxu0 0.0
    %1418 = vmatmul.mubr.f32.gmra.mrb[0].mxu0 %v372
    %v1419 = vpop.f32.mrb[0].mxu0
    %v1420 = vadd.f32 %v1275, %v1419
    %v1421 = vpop.f32.mrb[0].mxu0
    %1422 = vmatprep.mubr.f32.mxu0 0.0
    %1423 = vmatmul.mubr.f32.gmra.mrb[0].mxu0 %v375
    %v1424 = vpop.f32.mrb[0].mxu0
    %v1425 = vadd.f32 %v1280, %v1424
    %v1426 = vpop.f32.mrb[0].mxu0
    %1427 = vmatprep.mubr.f32.mxu0 0.0
    %1428 = vmatmul.mubr.f32.gmra.mrb[0].mxu0 %v378
    %v1429 = vpop.f32.mrb[0].mxu0
    %v1430 = vadd.f32 %v1285, %v1429
    %v1431 = vpop.f32.mrb[0].mxu0
    %1432 = vmatprep.mubr.f32.mxu0 0.0
    %1433 = vmatmul.mubr.f32.gmra.mrb[0].mxu0 %v381
    %v1434 = vpop.f32.mrb[0].mxu0
    %v1435 = vadd.f32 %v1290, %v1434
    %v1436 = vpop.f32.mrb[0].mxu0
    %1437 = vmatprep.mubr.f32.mxu0 0.0
    %1438 = vmatmul.mubr.f32.gmra.mrb[0].mxu0 %v384
    %v1439 = vpop.f32.mrb[0].mxu0
    %v1440 = vadd.f32 %v1295, %v1439
    %v1441 = vpop.f32.mrb[0].mxu0
    %1442 = vmatprep.mubr.f32.mxu0 0.0
    %1443 = vmatmul.mubr.f32.gmra.mrb[0].mxu0 %v387
    %v1444 = vpop.f32.mrb[0].mxu0
    %v1445 = vadd.f32 %v1300, %v1444
    %v1446 = vpop.f32.mrb[0].mxu0
    %1447 = vmatprep.mubr.f32.mxu0 0.0
    %1448 = vmatmul.mubr.f32.gmra.mrb[0].mxu0 %v390
    %v1449 = vpop.f32.mrb[0].mxu0
    %v1450 = vadd.f32 %v1305, %v1449
    %v1451 = vpop.f32.mrb[0].mxu0
    %1452 = vmatprep.mubr.f32.mxu0 0.0
    %1453 = vmatmul.mubr.f32.gmra.mrb[0].mxu0 %v393
    %v1454 = vpop.f32.mrb[0].mxu0
    %v1455 = vadd.f32 %v1310, %v1454
    %v1456 = vpop.f32.mrb[0].mxu0
    %1457 = vmatprep.mubr.f32.mxu0 0.0
    %1458 = vmatmul.mubr.f32.gmra.mrb[0].mxu0 %v396
    %v1459 = vpop.f32.mrb[0].mxu0
    %v1460 = vadd.f32 %v1315, %v1459
    %v1461 = vpop.f32.mrb[0].mxu0
    %1462 = vmatprep.mubr.f32.mxu0 0.0
    %1463 = vmatmul.mubr.f32.gmra.mrb[0].mxu0 %v399
    %v1464 = vpop.f32.mrb[0].mxu0
    %v1465 = vadd.f32 %v1320, %v1464
    %v1466 = vpop.f32.mrb[0].mxu0
    %1467 = vmatprep.mubr.f32.mxu0 0.0
    %1468 = vmatmul.mubr.f32.gmra.mrb[0].mxu0 %v402
    %v1469 = vpop.f32.mrb[0].mxu0
    %v1470 = vadd.f32 %v1325, %v1469
    %v1471 = vpop.f32.mrb[0].mxu0
    %1472 = vdwg.mxu0
    %v1473 = vadd.f32 %v1395, %v552
    %v1474 = vadd.f32 %v1400, %v557
    %v1475 = vadd.f32 %v1405, %v562
    %v1476 = vadd.f32 %v1410, %v567
    %v1477 = vadd.f32 %v1415, %v572
    %v1478 = vadd.f32 %v1420, %v577
    %v1479 = vadd.f32 %v1425, %v582
    %v1480 = vadd.f32 %v1430, %v587
    %v1481 = vadd.f32 %v1435, %v592
    %v1482 = vadd.f32 %v1440, %v597
    %v1483 = vadd.f32 %v1445, %v602
    %v1484 = vadd.f32 %v1450, %v607
    %v1485 = vadd.f32 %v1455, %v612
    %v1486 = vadd.f32 %v1460, %v617
    %v1487 = vadd.f32 %v1465, %v622
    %v1488 = vadd.f32 %v1470, %v627
    %v1489 = vmax.f32 %v1473, %v1481
    %v1490 = vmax.f32 %v1474, %v1482
    %v1491 = vmax.f32 %v1475, %v1483
    %v1492 = vmax.f32 %v1476, %v1484
    %v1493 = vmax.f32 %v1477, %v1485
    %v1494 = vmax.f32 %v1478, %v1486
    %v1495 = vmax.f32 %v1479, %v1487
    %v1496 = vmax.f32 %v1480, %v1488
    %v1497 = vmax.f32 %v1489, 0.0
    %v1498 = vmax.f32 %v1490, 0.0
    %v1499 = vmax.f32 %v1491, 0.0
    %v1500 = vmax.f32 %v1492, 0.0
    %v1501 = vmax.f32 %v1493, 0.0
    %v1502 = vmax.f32 %v1494, 0.0
    %v1503 = vmax.f32 %v1495, 0.0
    %v1504 = vmax.f32 %v1496, 0.0
    %v1505 = vsel %vm134, 0.0, %v1497
    %v1506 = vsel %vm135, 0.0, %v1498
    %v1507 = vsel %vm136, 0.0, %v1499
    %v1508 = vsel %vm137, 0.0, %v1500
    %v1509 = vsel %vm138, 0.0, %v1501
    %v1510 = vsel %vm139, 0.0, %v1502
    %v1511 = vsel %vm140, 0.0, %v1503
    %v1512 = vsel %vm141, 0.0, %v1504
    %1513 = vmatprep.subr.mxu0 0.0
    %1514 = vmatpush1.msra.mxu0 %v1509
    %1515 = vmatprep.subr.mxu0 0.0
    %1516 = vmatpush1.msra.mxu0 %v1510
    %1517 = vmatprep.subr.mxu0 0.0
    %1518 = vmatpush1.msra.mxu0 %v1511
    %1519 = vmatprep.subr.mxu0 0.0
    %1520 = vmatpush1.msra.mxu0 %v1512
    %1521 = vmatprep.subr.mxu0 0.0
    %1522 = vmatpush1.msra.mxu0 0.0
    %1523 = vmatprep.subr.mxu0 0.0
    %1524 = vmatpush1.msra.mxu0 0.0
    %1525 = vmatprep.subr.mxu0 0.0
    %1526 = vmatpush1.msra.mxu0 0.0
    %1527 = vmatprep.subr.mxu0 0.0
    %1528 = vmatpush1.msra.mxu0 0.0
    %1529 = vmatprep.subr.mxu0 0.0
    %1530 = vmatpush1.msra.mxu0 0.0
    %1531 = vmatprep.subr.mxu0 0.0
    %1532 = vmatpush1.msra.mxu0 0.0
    %1533 = vmatprep.subr.mxu0 0.0
    %1534 = vmatpush1.msra.mxu0 0.0
    %1535 = vmatprep.subr.mxu0 0.0
    %1536 = vmatpush1.msra.mxu0 0.0
    %1537 = vmatprep.subr.mxu0 0.0
    %1538 = vmatpush1.msra.mxu0 0.0
    %1539 = vmatprep.subr.mxu0 0.0
    %1540 = vmatpush1.msra.mxu0 0.0
    %1541 = vmatprep.subr.mxu0 0.0
    %1542 = vmatpush1.msra.mxu0 0.0
    %1543 = vmatprep.subr.mxu0 0.0
    %1544 = vmatpush1.msra.mxu0 0.0
    %1545 = vmatprep.subr.mxu0 0.0
    %1546 = vmatpush1.msra.mxu0 0.0
    %1547 = vmatprep.subr.mxu0 0.0
    %1548 = vmatpush1.msra.mxu0 0.0
    %1549 = vmatprep.subr.mxu0 0.0
    %1550 = vmatpush1.msra.mxu0 0.0
    %1551 = vmatprep.subr.mxu0 0.0
    %1552 = vmatpush1.msra.mxu0 0.0
    %1553 = vmatprep.subr.mxu0 0.0
    %1554 = vmatpush1.msra.mxu0 0.0
    %1555 = vmatprep.subr.mxu0 0.0
    %1556 = vmatpush1.msra.mxu0 0.0
    %1557 = vmatprep.subr.mxu0 0.0
    %1558 = vmatpush1.msra.mxu0 0.0
    %1559 = vmatprep.subr.mxu0 0.0
    %1560 = vmatpush1.msra.mxu0 0.0
    %1561 = vmatprep.subr.mxu0 0.0
    %1562 = vmatpush1.msra.mxu0 0.0
    %1563 = vmatprep.subr.mxu0 0.0
    %1564 = vmatpush1.msra.mxu0 0.0
    %1565 = vmatprep.subr.mxu0 0.0
    %1566 = vmatpush1.msra.mxu0 0.0
    %1567 = vmatprep.subr.mxu0 0.0
    %1568 = vmatpush1.msra.mxu0 0.0
    %1569 = vmatprep.subr.mxu0 0.0
    %1570 = vmatpush1.msra.mxu0 0.0
    %1571 = vmatprep.subr.mxu0 0.0
    %1572 = vmatpush1.msra.mxu0 0.0
    %1573 = vmatprep.subr.mxu0 0.0
    %1574 = vmatpush1.msra.mxu0 0.0
    %1575 = vmatprep.subr.mxu0 0.0
    %1576 = vmatpush1.msra.mxu0 0.0
    %1577 = vmatprep.mubr.f32.mxu0 0.0
    %1578 = vmatmul.mubr.f32.gmra.mrb[0].mxu0 %v670
    %v1579 = vpop.f32.mrb[0].mxu0
    %v1580 = vadd.f32 0.0, %v1579
    %v1581 = vpop.f32.mrb[0].mxu0
    %1582 = vmatprep.mubr.f32.mxu0 0.0
    %1583 = vmatmul.mubr.f32.gmra.mrb[0].mxu0 %v673
    %v1584 = vpop.f32.mrb[0].mxu0
    %v1585 = vadd.f32 0.0, %v1584
    %v1586 = vpop.f32.mrb[0].mxu0
    %1587 = vdwg.mxu0
    %1594 = vrot.lane.b32.xlu0 %v1505, 127
    %v1595 = vpop.permute.xlu0 %1594
    %1596 = vrot.lane.b32.xlu0 %v1506, 127
    %v1597 = vpop.permute.xlu0 %1596
    %1598 = vrot.lane.b32.xlu0 %v1507, 127
    %v1599 = vpop.permute.xlu0 %1598
    %1600 = vrot.lane.b32.xlu0 %v1508, 127
    %v1601 = vpop.permute.xlu0 %1600
    %1602 = vrot.lane.b32.xlu0 %v1509, 127
    %v1603 = vpop.permute.xlu0 %1602
    %1604 = vrot.lane.b32.xlu0 %v1510, 127
    %v1605 = vpop.permute.xlu0 %1604
    %1612 = vmatprep.subr.mxu0 0.0
    %1613 = vmatpush1.msra.mxu0 %v1595
    %1614 = vmatprep.subr.mxu0 0.0
    %1615 = vmatpush1.msra.mxu0 %v1597
    %1616 = vmatprep.subr.mxu0 0.0
    %1617 = vmatpush1.msra.mxu0 %v1599
    %1618 = vmatprep.subr.mxu0 0.0
    %1619 = vmatpush1.msra.mxu0 %v1601
    %1620 = vmatprep.subr.mxu0 0.0
    %1621 = vmatpush1.msra.mxu0 %v1603
    %1622 = vmatprep.subr.mxu0 0.0
    %1623 = vmatpush1.msra.mxu0 %v1605
    %1624 = vmatprep.subr.mxu0 0.0
    %1625 = vmatpush1.msra.mxu0 0.0
    %1626 = vmatprep.subr.mxu0 0.0
    %1627 = vmatpush1.msra.mxu0 0.0
    %1628 = vmatprep.subr.mxu0 0.0
    %1629 = vmatpush1.msra.mxu0 0.0
    %1630 = vmatprep.subr.mxu0 0.0
    %1631 = vmatpush1.msra.mxu0 0.0
    %1632 = vmatprep.subr.mxu0 0.0
    %1633 = vmatpush1.msra.mxu0 0.0
    %1634 = vmatprep.subr.mxu0 0.0
    %1635 = vmatpush1.msra.mxu0 0.0
    %1636 = vmatprep.subr.mxu0 0.0
    %1637 = vmatpush1.msra.mxu0 0.0
    %1638 = vmatprep.subr.mxu0 0.0
    %1639 = vmatpush1.msra.mxu0 0.0
    %1640 = vmatprep.subr.mxu0 0.0
    %1641 = vmatpush1.msra.mxu0 0.0
    %1642 = vmatprep.subr.mxu0 0.0
    %1643 = vmatpush1.msra.mxu0 0.0
    %1644 = vmatprep.subr.mxu0 0.0
    %1645 = vmatpush1.msra.mxu0 0.0
    %1646 = vmatprep.subr.mxu0 0.0
    %1647 = vmatpush1.msra.mxu0 0.0
    %1648 = vmatprep.subr.mxu0 0.0
    %1649 = vmatpush1.msra.mxu0 0.0
    %1650 = vmatprep.subr.mxu0 0.0
    %1651 = vmatpush1.msra.mxu0 0.0
    %1652 = vmatprep.subr.mxu0 0.0
    %1653 = vmatpush1.msra.mxu0 0.0
    %1654 = vmatprep.subr.mxu0 0.0
    %1655 = vmatpush1.msra.mxu0 0.0
    %1656 = vmatprep.subr.mxu0 0.0
    %1657 = vmatpush1.msra.mxu0 0.0
    %1658 = vmatprep.subr.mxu0 0.0
    %1659 = vmatpush1.msra.mxu0 0.0
    %1660 = vmatprep.subr.mxu0 0.0
    %1661 = vmatpush1.msra.mxu0 0.0
    %1662 = vmatprep.subr.mxu0 0.0
    %1663 = vmatpush1.msra.mxu0 0.0
    %1664 = vmatprep.subr.mxu0 0.0
    %1665 = vmatpush1.msra.mxu0 0.0
    %1666 = vmatprep.subr.mxu0 0.0
    %1667 = vmatpush1.msra.mxu0 0.0
    %1668 = vmatprep.subr.mxu0 0.0
    %1669 = vmatpush1.msra.mxu0 0.0
    %1670 = vmatprep.subr.mxu0 0.0
    %1671 = vmatpush1.msra.mxu0 0.0
    %1672 = vmatprep.subr.mxu0 0.0
    %1673 = vmatpush1.msra.mxu0 0.0
    %1674 = vmatprep.subr.mxu0 0.0
    %1675 = vmatpush1.msra.mxu0 0.0
    %1676 = vmatprep.mubr.f32.mxu0 0.0
    %1677 = vmatmul.mubr.f32.gmra.mrb[0].mxu0 %v776
    %v1678 = vpop.f32.mrb[0].mxu0
    %v1679 = vadd.f32 %v1580, %v1678
    %v1680 = vpop.f32.mrb[0].mxu0
    %1681 = vmatprep.mubr.f32.mxu0 0.0
    %1682 = vmatmul.mubr.f32.gmra.mrb[0].mxu0 %v779
    %v1683 = vpop.f32.mrb[0].mxu0
    %v1684 = vadd.f32 %v1585, %v1683
    %v1685 = vpop.f32.mrb[0].mxu0
    %1686 = vdwg.mxu0
    %v1687 = vadd.f32 %v1679, %v859
    %v1688 = vadd.f32 %v1684, %v864
    %1689 = vrot.lane.b32.xlu0 %v1505, 126
    %v1690 = vpop.permute.xlu0 %1689
    %1691 = vrot.lane.b32.xlu0 %v1506, 126
    %v1692 = vpop.permute.xlu0 %1691
    %1695 = vmatprep.subr.mxu0 0.0
    %1696 = vmatpush1.msra.mxu0 %v1690
    %1697 = vmatprep.subr.mxu0 0.0
    %1698 = vmatpush1.msra.mxu0 %v1692
    %1699 = vmatprep.subr.mxu0 0.0
    %1700 = vmatpush1.msra.mxu0 0.0
    %1701 = vmatprep.subr.mxu0 0.0
    %1702 = vmatpush1.msra.mxu0 0.0
    %1703 = vmatprep.subr.mxu0 0.0
    %1704 = vmatpush1.msra.mxu0 0.0
    %1705 = vmatprep.subr.mxu0 0.0
    %1706 = vmatpush1.msra.mxu0 0.0
    %1707 = vmatprep.subr.mxu0 0.0
    %1708 = vmatpush1.msra.mxu0 0.0
    %1709 = vmatprep.subr.mxu0 0.0
    %1710 = vmatpush1.msra.mxu0 0.0
    %1711 = vmatprep.subr.mxu0 0.0
    %1712 = vmatpush1.msra.mxu0 0.0
    %1713 = vmatprep.subr.mxu0 0.0
    %1714 = vmatpush1.msra.mxu0 0.0
    %1715 = vmatprep.subr.mxu0 0.0
    %1716 = vmatpush1.msra.mxu0 0.0
    %1717 = vmatprep.subr.mxu0 0.0
    %1718 = vmatpush1.msra.mxu0 0.0
    %1719 = vmatprep.subr.mxu0 0.0
    %1720 = vmatpush1.msra.mxu0 0.0
    %1721 = vmatprep.subr.mxu0 0.0
    %1722 = vmatpush1.msra.mxu0 0.0
    %1723 = vmatprep.subr.mxu0 0.0
    %1724 = vmatpush1.msra.mxu0 0.0
    %1725 = vmatprep.subr.mxu0 0.0
    %1726 = vmatpush1.msra.mxu0 0.0
    %1727 = vmatprep.subr.mxu0 0.0
    %1728 = vmatpush1.msra.mxu0 0.0
    %1729 = vmatprep.subr.mxu0 0.0
    %1730 = vmatpush1.msra.mxu0 0.0
    %1731 = vmatprep.subr.mxu0 0.0
    %1732 = vmatpush1.msra.mxu0 0.0
    %1733 = vmatprep.subr.mxu0 0.0
    %1734 = vmatpush1.msra.mxu0 0.0
    %1735 = vmatprep.subr.mxu0 0.0
    %1736 = vmatpush1.msra.mxu0 0.0
    %1737 = vmatprep.subr.mxu0 0.0
    %1738 = vmatpush1.msra.mxu0 0.0
    %1739 = vmatprep.subr.mxu0 0.0
    %1740 = vmatpush1.msra.mxu0 0.0
    %1741 = vmatprep.subr.mxu0 0.0
    %1742 = vmatpush1.msra.mxu0 0.0
    %1743 = vmatprep.subr.mxu0 0.0
    %1744 = vmatpush1.msra.mxu0 0.0
    %1745 = vmatprep.subr.mxu0 0.0
    %1746 = vmatpush1.msra.mxu0 0.0
    %1747 = vmatprep.subr.mxu0 0.0
    %1748 = vmatpush1.msra.mxu0 0.0
    %1749 = vmatprep.subr.mxu0 0.0
    %1750 = vmatpush1.msra.mxu0 0.0
    %1751 = vmatprep.subr.mxu0 0.0
    %1752 = vmatpush1.msra.mxu0 0.0
    %1753 = vmatprep.subr.mxu0 0.0
    %1754 = vmatpush1.msra.mxu0 0.0
    %1755 = vmatprep.subr.mxu0 0.0
    %1756 = vmatpush1.msra.mxu0 0.0
    %1757 = vmatprep.subr.mxu0 0.0
    %1758 = vmatpush1.msra.mxu0 0.0
    %1759 = vmatprep.mubr.f32.mxu0 0.0
    %1760 = vmatmul.mubr.f32.gmra.mrb[0].mxu0 %v876
    %v1761 = vpop.f32.mrb[0].mxu0
    %v1762 = vadd.f32 0.0, %v1761
    %v1763 = vpop.f32.mrb[0].mxu0
    %1764 = vmatprep.mubr.f32.mxu0 0.0
    %1765 = vmatmul.mubr.f32.gmra.mrb[0].mxu0 %v879
    %v1766 = vpop.f32.mrb[0].mxu0
    %v1767 = vadd.f32 0.0, %v1766
    %v1768 = vpop.f32.mrb[0].mxu0
    %1769 = vdwg.mxu0
    %1772 = vrot.lane.b32.xlu0 %v1511, 127
    %v1773 = vpop.permute.xlu0 %1772
    %1774 = vrot.lane.b32.xlu0 %v1512, 127
    %v1775 = vpop.permute.xlu0 %1774
    %1778 = vmatprep.subr.mxu0 0.0
    %1779 = vmatpush1.msra.mxu0 %v1595
    %1780 = vmatprep.subr.mxu0 0.0
    %1781 = vmatpush1.msra.mxu0 %v1597
    %1782 = vmatprep.subr.mxu0 0.0
    %1783 = vmatpush1.msra.mxu0 %v1599
    %1784 = vmatprep.subr.mxu0 0.0
    %1785 = vmatpush1.msra.mxu0 %v1601
    %1786 = vmatprep.subr.mxu0 0.0
    %1787 = vmatpush1.msra.mxu0 %v1603
    %1788 = vmatprep.subr.mxu0 0.0
    %1789 = vmatpush1.msra.mxu0 %v1605
    %1790 = vmatprep.subr.mxu0 0.0
    %1791 = vmatpush1.msra.mxu0 %v1773
    %1792 = vmatprep.subr.mxu0 0.0
    %1793 = vmatpush1.msra.mxu0 %v1775
    %1794 = vmatprep.subr.mxu0 0.0
    %1795 = vmatpush1.msra.mxu0 0.0
    %1796 = vmatprep.subr.mxu0 0.0
    %1797 = vmatpush1.msra.mxu0 0.0
    %1798 = vmatprep.subr.mxu0 0.0
    %1799 = vmatpush1.msra.mxu0 0.0
    %1800 = vmatprep.subr.mxu0 0.0
    %1801 = vmatpush1.msra.mxu0 0.0
    %1802 = vmatprep.subr.mxu0 0.0
    %1803 = vmatpush1.msra.mxu0 0.0
    %1804 = vmatprep.subr.mxu0 0.0
    %1805 = vmatpush1.msra.mxu0 0.0
    %1806 = vmatprep.subr.mxu0 0.0
    %1807 = vmatpush1.msra.mxu0 0.0
    %1808 = vmatprep.subr.mxu0 0.0
    %1809 = vmatpush1.msra.mxu0 0.0
    %1810 = vmatprep.subr.mxu0 0.0
    %1811 = vmatpush1.msra.mxu0 0.0
    %1812 = vmatprep.subr.mxu0 0.0
    %1813 = vmatpush1.msra.mxu0 0.0
    %1814 = vmatprep.subr.mxu0 0.0
    %1815 = vmatpush1.msra.mxu0 0.0
    %1816 = vmatprep.subr.mxu0 0.0
    %1817 = vmatpush1.msra.mxu0 0.0
    %1818 = vmatprep.subr.mxu0 0.0
    %1819 = vmatpush1.msra.mxu0 0.0
    %1820 = vmatprep.subr.mxu0 0.0
    %1821 = vmatpush1.msra.mxu0 0.0
    %1822 = vmatprep.subr.mxu0 0.0
    %1823 = vmatpush1.msra.mxu0 0.0
    %1824 = vmatprep.subr.mxu0 0.0
    %1825 = vmatpush1.msra.mxu0 0.0
    %1826 = vmatprep.subr.mxu0 0.0
    %1827 = vmatpush1.msra.mxu0 0.0
    %1828 = vmatprep.subr.mxu0 0.0
    %1829 = vmatpush1.msra.mxu0 0.0
    %1830 = vmatprep.subr.mxu0 0.0
    %1831 = vmatpush1.msra.mxu0 0.0
    %1832 = vmatprep.subr.mxu0 0.0
    %1833 = vmatpush1.msra.mxu0 0.0
    %1834 = vmatprep.subr.mxu0 0.0
    %1835 = vmatpush1.msra.mxu0 0.0
    %1836 = vmatprep.subr.mxu0 0.0
    %1837 = vmatpush1.msra.mxu0 0.0
    %1838 = vmatprep.subr.mxu0 0.0
    %1839 = vmatpush1.msra.mxu0 0.0
    %1840 = vmatprep.subr.mxu0 0.0
    %1841 = vmatpush1.msra.mxu0 0.0
    %1842 = vmatprep.mubr.f32.mxu0 0.0
    %1843 = vmatmul.mubr.f32.gmra.mrb[0].mxu0 %v966
    %v1844 = vpop.f32.mrb[0].mxu0
    %v1845 = vadd.f32 %v1762, %v1844
    %v1846 = vpop.f32.mrb[0].mxu0
    %1847 = vmatprep.mubr.f32.mxu0 0.0
    %1848 = vmatmul.mubr.f32.gmra.mrb[0].mxu0 %v969
    %v1849 = vpop.f32.mrb[0].mxu0
    %v1850 = vadd.f32 %v1767, %v1849
    %v1851 = vpop.f32.mrb[0].mxu0
    %1852 = vdwg.mxu0
    %v1853 = vadd.f32 %v1845, %v859
    %v1854 = vadd.f32 %v1850, %v864
    %v1855 = vmax.f32 %v1687, %v1853
    %v1856 = vmax.f32 %v1688, %v1854
    %v1857 = vmax.f32 %v1855, 0.0
    %v1858 = vmax.f32 %v1856, 0.0
    %1859 = vst.msk [vmem:[#allocation2 + $0x1] sm:$0x1] %vm1052, %v1857
    %v1862 = vunpack.c.l.s4 1983009808
    %v1863 = vunpack.c.0.s8 %v1862
    %v1864 = vlaneseq
    %v1865 = vshrl.u32 %v1864, 7
    %v1866 = vsub.s32 %v1863, %v1865
    %v1867 = vrot.slane %v1857, %v1866
    %v1868 = vrot.slane %v1867, 7
    %v1869 = vrot.slane %v1868, 2
    %1870 = vrot.lane.b32.xlu0 %v1869, 32
    %v1871 = vpop.permute.xlu0 %1870
    %1873 = vst.msk [vmem:[#allocation2 + $0x1] sm:$0x1] %vm1067, %v1871
    %v1874 = vcombine.high %v1867, %v1867
    %1875 = vrot.lane.b32.xlu0 %v1874, 64
    %v1876 = vpop.permute.xlu0 %1875
    %1878 = vst.msk [vmem:[#allocation2 + $0x1] sm:$0x1] %vm1073, %v1876
    %v1879 = vrot.slane %v1874, 7
    %v1880 = vrot.slane %v1879, 2
    %1881 = vrot.lane.b32.xlu0 %v1880, 96
    %v1882 = vpop.permute.xlu0 %1881
    %1884 = vst.msk [vmem:[#allocation2 + $0x1] sm:$0x1] %vm1080, %v1882
    %v1885 = vcombine.high %v1857, %v1857
    %v1887 = vunpack.c.l.s4 1983009808
    %v1888 = vunpack.c.0.s8 %v1887
    %v1889 = vlaneseq
    %v1890 = vshrl.u32 %v1889, 7
    %v1891 = vsub.s32 %v1888, %v1890
    %v1892 = vrot.slane %v1885, %v1891
    %1894 = vst.msk [vmem:[#allocation2 + $0x3] sm:$0x1] %vm1052, %v1892
    %v1895 = vrot.slane %v1892, 7
    %v1896 = vrot.slane %v1895, 2
    %1897 = vrot.lane.b32.xlu0 %v1896, 32
    %v1898 = vpop.permute.xlu0 %1897
    %1900 = vst.msk [vmem:[#allocation2 + $0x3] sm:$0x1] %vm1067, %v1898
    %v1901 = vcombine.high %v1892, %v1892
    %1902 = vrot.lane.b32.xlu0 %v1901, 64
    %v1903 = vpop.permute.xlu0 %1902
    %1905 = vst.msk [vmem:[#allocation2 + $0x3] sm:$0x1] %vm1073, %v1903
    %v1906 = vrot.slane %v1901, 7
    %v1907 = vrot.slane %v1906, 2
    %1908 = vrot.lane.b32.xlu0 %v1907, 96
    %v1909 = vpop.permute.xlu0 %1908
    %1911 = vst.msk [vmem:[#allocation2 + $0x3] sm:$0x1] %vm1080, %v1909
    %1912 = vst.msk [vmem:[#allocation2 + $0x5] sm:$0x1] %vm1052, %v1858
    %v1915 = vunpack.c.l.s4 1983009808
    %v1916 = vunpack.c.0.s8 %v1915
    %v1917 = vlaneseq
    %v1918 = vshrl.u32 %v1917, 7
    %v1919 = vsub.s32 %v1916, %v1918
    %v1920 = vrot.slane %v1858, %v1919
    %v1921 = vrot.slane %v1920, 7
    %v1922 = vrot.slane %v1921, 2
    %1923 = vrot.lane.b32.xlu0 %v1922, 32
    %v1924 = vpop.permute.xlu0 %1923
    %1926 = vst.msk [vmem:[#allocation2 + $0x5] sm:$0x1] %vm1067, %v1924
    %v1927 = vcombine.high %v1920, %v1920
    %1928 = vrot.lane.b32.xlu0 %v1927, 64
    %v1929 = vpop.permute.xlu0 %1928
    %1931 = vst.msk [vmem:[#allocation2 + $0x5] sm:$0x1] %vm1073, %v1929
    %v1932 = vrot.slane %v1927, 7
    %v1933 = vrot.slane %v1932, 2
    %1934 = vrot.lane.b32.xlu0 %v1933, 96
    %v1935 = vpop.permute.xlu0 %1934
    %1937 = vst.msk [vmem:[#allocation2 + $0x5] sm:$0x1] %vm1080, %v1935
    %v1938 = vcombine.high %v1858, %v1858
    %v1940 = vunpack.c.l.s4 1983009808
    %v1941 = vunpack.c.0.s8 %v1940
    %v1942 = vlaneseq
    %v1943 = vshrl.u32 %v1942, 7
    %v1944 = vsub.s32 %v1941, %v1943
    %v1945 = vrot.slane %v1938, %v1944
    %1947 = vst.msk [vmem:[#allocation2 + $0x7] sm:$0x1] %vm1052, %v1945
    %v1948 = vrot.slane %v1945, 7
    %v1949 = vrot.slane %v1948, 2
    %1950 = vrot.lane.b32.xlu0 %v1949, 32
    %v1951 = vpop.permute.xlu0 %1950
    %1953 = vst.msk [vmem:[#allocation2 + $0x7] sm:$0x1] %vm1067, %v1951
    %v1954 = vcombine.high %v1945, %v1945
    %1955 = vrot.lane.b32.xlu0 %v1954, 64
    %v1956 = vpop.permute.xlu0 %1955
    %1958 = vst.msk [vmem:[#allocation2 + $0x7] sm:$0x1] %vm1073, %v1956
    %v1959 = vrot.slane %v1954, 7
    %v1960 = vrot.slane %v1959, 2
    %1961 = vrot.lane.b32.xlu0 %v1960, 96
    %v1962 = vpop.permute.xlu0 %1961
    %1964 = vst.msk [vmem:[#allocation2 + $0x7] sm:$0x1] %vm1080, %v1962
    %v1965 = vld [vmem:[#allocation2] sm:$0xff]
    %v1966 = vld [vmem:[%s9] sm:$0xff]
    %v1967 = vld [vmem:[%s9 + $0x8] sm:$0xff]
    %v1968 = vld [vmem:[%s9 + $0x10] sm:$0xff]
    %v1969 = vld [vmem:[%s9 + $0x18] sm:$0xff]
    %v1970 = vld [vmem:[%s9 + $0x20] sm:$0xff]
    %v1971 = vld [vmem:[%s9 + $0x28] sm:$0xff]
    %v1972 = vld [vmem:[%s9 + $0x30] sm:$0xff]
    %v1973 = vld [vmem:[%s9 + $0x38] sm:$0xff]
    %v1974 = vld [vmem:[%s9 + $0x40] sm:$0xff]
    %v1975 = vld [vmem:[%s9 + $0x48] sm:$0xff]
    %v1976 = vld [vmem:[%s9 + $0x50] sm:$0xff]
    %v1977 = vld [vmem:[%s9 + $0x58] sm:$0xff]
    %v1978 = vld [vmem:[%s9 + $0x60] sm:$0xff]
    %v1979 = vld [vmem:[%s9 + $0x68] sm:$0xff]
    %v1980 = vld [vmem:[%s9 + $0x70] sm:$0xff]
    %v1981 = vld [vmem:[%s9 + $0x78] sm:$0xff]
    %v1982 = vld [vmem:[%s9 + $0x80] sm:$0xff]
    %v1983 = vld [vmem:[%s9 + $0x88] sm:$0xff]
    %v1984 = vld [vmem:[%s9 + $0x90] sm:$0xff]
    %v1985 = vld [vmem:[%s9 + $0x98] sm:$0xff]
    %v1986 = vld [vmem:[%s9 + $0xa0] sm:$0xff]
    %v1987 = vld [vmem:[%s9 + $0xa8] sm:$0xff]
    %v1988 = vld [vmem:[%s9 + $0xb0] sm:$0xff]
    %v1989 = vld [vmem:[%s9 + $0xb8] sm:$0xff]
    %v1990 = vld [vmem:[%s9 + $0xc0] sm:$0xff]
    %v1991 = vld [vmem:[%s9 + $0xc8] sm:$0xff]
    %v1992 = vld [vmem:[%s9 + $0xd0] sm:$0xff]
    %v1993 = vld [vmem:[%s9 + $0xd8] sm:$0xff]
    %v1994 = vld [vmem:[%s9 + $0xe0] sm:$0xff]
    %v1995 = vld [vmem:[%s9 + $0xe8] sm:$0xff]
    %v1996 = vld [vmem:[%s9 + $0xf0] sm:$0xff]
    %v1997 = vld [vmem:[%s9 + $0xf8] sm:$0xff]
    %v1998 = vld [vmem:[%s9 + $0x100] sm:$0xff]
    %v1999 = vld [vmem:[%s9 + $0x108] sm:$0xff]
    %v2000 = vld [vmem:[%s9 + $0x110] sm:$0xff]
    %v2001 = vld [vmem:[%s9 + $0x118] sm:$0xff]
    %v2002 = vld [vmem:[%s9 + $0x120] sm:$0xff]
    %v2003 = vld [vmem:[%s9 + $0x128] sm:$0xff]
    %v2004 = vld [vmem:[%s9 + $0x130] sm:$0xff]
    %v2005 = vld [vmem:[%s9 + $0x138] sm:$0xff]
    %v2006 = vld [vmem:[%s9 + $0x140] sm:$0xff]
    %v2007 = vld [vmem:[%s9 + $0x148] sm:$0xff]
    %v2008 = vld [vmem:[%s9 + $0x150] sm:$0xff]
    %v2009 = vld [vmem:[%s9 + $0x158] sm:$0xff]
    %v2010 = vld [vmem:[%s9 + $0x160] sm:$0xff]
    %v2011 = vld [vmem:[%s9 + $0x168] sm:$0xff]
    %v2012 = vld [vmem:[%s9 + $0x170] sm:$0xff]
    %v2013 = vld [vmem:[%s9 + $0x178] sm:$0xff]
    %v2014 = vld [vmem:[%s9 + $0x180] sm:$0xff]
    %v2015 = vld [vmem:[%s9 + $0x188] sm:$0xff]
    %v2016 = vld [vmem:[%s9 + $0x190] sm:$0xff]
    %v2017 = vld [vmem:[%s9 + $0x198] sm:$0xff]
    %v2018 = vld [vmem:[%s9 + $0x1a0] sm:$0xff]
    %v2019 = vld [vmem:[%s9 + $0x1a8] sm:$0xff]
    %v2020 = vld [vmem:[%s9 + $0x1b0] sm:$0xff]
    %v2021 = vld [vmem:[%s9 + $0x1b8] sm:$0xff]
    %v2022 = vld [vmem:[%s9 + $0x1c0] sm:$0xff]
    %v2023 = vld [vmem:[%s9 + $0x1c8] sm:$0xff]
    %v2024 = vld [vmem:[%s9 + $0x1d0] sm:$0xff]
    %v2025 = vld [vmem:[%s9 + $0x1d8] sm:$0xff]
    %v2026 = vld [vmem:[%s9 + $0x1e0] sm:$0xff]
    %v2027 = vld [vmem:[%s9 + $0x1e8] sm:$0xff]
    %v2028 = vld [vmem:[%s9 + $0x1f0] sm:$0xff]
    %v2029 = vld [vmem:[%s9 + $0x1f8] sm:$0xff]
    %v2030 = vld [vmem:[%s10] sm:$0x1]
    %v2032 = vlaneseq
    %v2033 = vshrl.u32 %v2032, 7
    %v2034 = vsub.s32 0, %v2033
    %v2035 = vrot.slane %v2030, %v2034
    %v2038 = vcombine.high %v1965, %v1965
    %v2040 = vunpack.c.l.s4 1983009808
    %v2041 = vunpack.c.0.s8 %v2040
    %v2042 = vlaneseq
    %v2043 = vshrl.u32 %v2042, 7
    %v2044 = vsub.s32 %v2041, %v2043
    %v2045 = vrot.slane %v1965, %v2044
    %v2047 = vunpack.c.l.s4 1983009808
    %v2048 = vunpack.c.0.s8 %v2047
    %v2049 = vlaneseq
    %v2050 = vshrl.u32 %v2049, 7
    %v2051 = vsub.s32 %v2048, %v2050
    %v2052 = vrot.slane %v2038, %v2051
    %v2053 = vcombine.high %v2045, %v2045
    %v2054 = vcombine.high %v2052, %v2052
    %2059 = vmatprep.subr.mxu0 0.0
    %2060 = vmatpush1.msra.mxu0 %v1966
    %2061 = vmatprep.subr.mxu0 0.0
    %2062 = vmatpush1.msra.mxu0 %v1967
    %2063 = vmatprep.subr.mxu0 0.0
    %2064 = vmatpush1.msra.mxu0 %v1968
    %2065 = vmatprep.subr.mxu0 0.0
    %2066 = vmatpush1.msra.mxu0 %v1969
    %2067 = vmatprep.subr.mxu0 0.0
    %2068 = vmatpush1.msra.mxu0 %v1970
    %2069 = vmatprep.subr.mxu0 0.0
    %2070 = vmatpush1.msra.mxu0 %v1971
    %2071 = vmatprep.subr.mxu0 0.0
    %2072 = vmatpush1.msra.mxu0 %v1972
    %2073 = vmatprep.subr.mxu0 0.0
    %2074 = vmatpush1.msra.mxu0 %v1973
    %2075 = vmatprep.subr.mxu0 0.0
    %2076 = vmatpush1.msra.mxu0 %v1974
    %2077 = vmatprep.subr.mxu0 0.0
    %2078 = vmatpush1.msra.mxu0 %v1975
    %2079 = vmatprep.subr.mxu0 0.0
    %2080 = vmatpush1.msra.mxu0 %v1976
    %2081 = vmatprep.subr.mxu0 0.0
    %2082 = vmatpush1.msra.mxu0 %v1977
    %2083 = vmatprep.subr.mxu0 0.0
    %2084 = vmatpush1.msra.mxu0 %v1978
    %2085 = vmatprep.subr.mxu0 0.0
    %2086 = vmatpush1.msra.mxu0 %v1979
    %2087 = vmatprep.subr.mxu0 0.0
    %2088 = vmatpush1.msra.mxu0 %v1980
    %2089 = vmatprep.subr.mxu0 0.0
    %2090 = vmatpush1.msra.mxu0 %v1981
    %2091 = vmatprep.subr.mxu0 0.0
    %2092 = vmatpush1.msra.mxu0 %v1982
    %2093 = vmatprep.subr.mxu0 0.0
    %2094 = vmatpush1.msra.mxu0 %v1983
    %2095 = vmatprep.subr.mxu0 0.0
    %2096 = vmatpush1.msra.mxu0 %v1984
    %2097 = vmatprep.subr.mxu0 0.0
    %2098 = vmatpush1.msra.mxu0 %v1985
    %2099 = vmatprep.subr.mxu0 0.0
    %2100 = vmatpush1.msra.mxu0 %v1986
    %2101 = vmatprep.subr.mxu0 0.0
    %2102 = vmatpush1.msra.mxu0 %v1987
    %2103 = vmatprep.subr.mxu0 0.0
    %2104 = vmatpush1.msra.mxu0 %v1988
    %2105 = vmatprep.subr.mxu0 0.0
    %2106 = vmatpush1.msra.mxu0 %v1989
    %2107 = vmatprep.subr.mxu0 0.0
    %2108 = vmatpush1.msra.mxu0 %v1990
    %2109 = vmatprep.subr.mxu0 0.0
    %2110 = vmatpush1.msra.mxu0 %v1991
    %2111 = vmatprep.subr.mxu0 0.0
    %2112 = vmatpush1.msra.mxu0 %v1992
    %2113 = vmatprep.subr.mxu0 0.0
    %2114 = vmatpush1.msra.mxu0 %v1993
    %2115 = vmatprep.subr.mxu0 0.0
    %2116 = vmatpush1.msra.mxu0 %v1994
    %2117 = vmatprep.subr.mxu0 0.0
    %2118 = vmatpush1.msra.mxu0 %v1995
    %2119 = vmatprep.subr.mxu0 0.0
    %2120 = vmatpush1.msra.mxu0 %v1996
    %2121 = vmatprep.subr.mxu0 0.0
    %2122 = vmatpush1.msra.mxu0 %v1997
    %2123 = vmatprep.mubr.f32.mxu0 %v2053
    %2124 = vmatmul.mubr.f32.gmra.mrb[0].mxu0 %v2045
    %v2125 = vpop.f32.mrb[0].mxu0
    %v2126 = vadd.f32 %v2035, %v2125
    %v2127 = vpop.f32.mrb[0].mxu0
    %2128 = vdwg.mxu0
    %2129 = vmatprep.subr.mxu0 0.0
    %2130 = vmatpush1.msra.mxu0 %v1998
    %2131 = vmatprep.subr.mxu0 0.0
    %2132 = vmatpush1.msra.mxu0 %v1999
    %2133 = vmatprep.subr.mxu0 0.0
    %2134 = vmatpush1.msra.mxu0 %v2000
    %2135 = vmatprep.subr.mxu0 0.0
    %2136 = vmatpush1.msra.mxu0 %v2001
    %2137 = vmatprep.subr.mxu0 0.0
    %2138 = vmatpush1.msra.mxu0 %v2002
    %2139 = vmatprep.subr.mxu0 0.0
    %2140 = vmatpush1.msra.mxu0 %v2003
    %2141 = vmatprep.subr.mxu0 0.0
    %2142 = vmatpush1.msra.mxu0 %v2004
    %2143 = vmatprep.subr.mxu0 0.0
    %2144 = vmatpush1.msra.mxu0 %v2005
    %2145 = vmatprep.subr.mxu0 0.0
    %2146 = vmatpush1.msra.mxu0 %v2006
    %2147 = vmatprep.subr.mxu0 0.0
    %2148 = vmatpush1.msra.mxu0 %v2007
    %2149 = vmatprep.subr.mxu0 0.0
    %2150 = vmatpush1.msra.mxu0 %v2008
    %2151 = vmatprep.subr.mxu0 0.0
    %2152 = vmatpush1.msra.mxu0 %v2009
    %2153 = vmatprep.subr.mxu0 0.0
    %2154 = vmatpush1.msra.mxu0 %v2010
    %2155 = vmatprep.subr.mxu0 0.0
    %2156 = vmatpush1.msra.mxu0 %v2011
    %2157 = vmatprep.subr.mxu0 0.0
    %2158 = vmatpush1.msra.mxu0 %v2012
    %2159 = vmatprep.subr.mxu0 0.0
    %2160 = vmatpush1.msra.mxu0 %v2013
    %2161 = vmatprep.subr.mxu0 0.0
    %2162 = vmatpush1.msra.mxu0 %v2014
    %2163 = vmatprep.subr.mxu0 0.0
    %2164 = vmatpush1.msra.mxu0 %v2015
    %2165 = vmatprep.subr.mxu0 0.0
    %2166 = vmatpush1.msra.mxu0 %v2016
    %2167 = vmatprep.subr.mxu0 0.0
    %2168 = vmatpush1.msra.mxu0 %v2017
    %2169 = vmatprep.subr.mxu0 0.0
    %2170 = vmatpush1.msra.mxu0 %v2018
    %2171 = vmatprep.subr.mxu0 0.0
    %2172 = vmatpush1.msra.mxu0 %v2019
    %2173 = vmatprep.subr.mxu0 0.0
    %2174 = vmatpush1.msra.mxu0 %v2020
    %2175 = vmatprep.subr.mxu0 0.0
    %2176 = vmatpush1.msra.mxu0 %v2021
    %2177 = vmatprep.subr.mxu0 0.0
    %2178 = vmatpush1.msra.mxu0 %v2022
    %2179 = vmatprep.subr.mxu0 0.0
    %2180 = vmatpush1.msra.mxu0 %v2023
    %2181 = vmatprep.subr.mxu0 0.0
    %2182 = vmatpush1.msra.mxu0 %v2024
    %2183 = vmatprep.subr.mxu0 0.0
    %2184 = vmatpush1.msra.mxu0 %v2025
    %2185 = vmatprep.subr.mxu0 0.0
    %2186 = vmatpush1.msra.mxu0 %v2026
    %2187 = vmatprep.subr.mxu0 0.0
    %2188 = vmatpush1.msra.mxu0 %v2027
    %2189 = vmatprep.subr.mxu0 0.0
    %2190 = vmatpush1.msra.mxu0 %v2028
    %2191 = vmatprep.subr.mxu0 0.0
    %2192 = vmatpush1.msra.mxu0 %v2029
    %2193 = vmatprep.mubr.f32.mxu0 %v2054
    %2194 = vmatmul.mubr.f32.gmra.mrb[0].mxu0 %v2052
    %v2195 = vpop.f32.mrb[0].mxu0
    %v2196 = vadd.f32 %v2126, %v2195
    %v2197 = vpop.f32.mrb[0].mxu0
    %2198 = vdwg.mxu0
    %v2199 = vmax.f32 %v2196, 0.0
    %v2200 = vld [vmem:[%s11] sm:$0xff]
    %v2201 = vld [vmem:[%s11 + $0x8] sm:$0xff]
    %v2202 = vld [vmem:[%s11 + $0x10] sm:$0xff]
    %v2203 = vld [vmem:[%s11 + $0x18] sm:$0xff]
    %v2204 = vld [vmem:[%s11 + $0x20] sm:$0xff]
    %v2205 = vld [vmem:[%s11 + $0x28] sm:$0xff]
    %v2206 = vld [vmem:[%s11 + $0x30] sm:$0xff]
    %v2207 = vld [vmem:[%s11 + $0x38] sm:$0xff]
    %v2208 = vld [vmem:[%s12] sm:$0x1]
    %v2210 = vlaneseq
    %v2211 = vshrl.u32 %v2210, 7
    %v2212 = vsub.s32 0, %v2211
    %v2213 = vrot.slane %v2208, %v2212
    %v2216 = vsel %vm964, %v2199, 0
    %2218 = vmatprep.subr.mxu0 0.0
    %2219 = vmatpush1.msra.mxu0 %v2200
    %2220 = vmatprep.subr.mxu0 0.0
    %2221 = vmatpush1.msra.mxu0 %v2201
    %2222 = vmatprep.subr.mxu0 0.0
    %2223 = vmatpush1.msra.mxu0 %v2202
    %2224 = vmatprep.subr.mxu0 0.0
    %2225 = vmatpush1.msra.mxu0 %v2203
    %2226 = vmatprep.subr.mxu0 0.0
    %2227 = vmatpush1.msra.mxu0 %v2204
    %2228 = vmatprep.subr.mxu0 0.0
    %2229 = vmatpush1.msra.mxu0 %v2205
    %2230 = vmatprep.subr.mxu0 0.0
    %2231 = vmatpush1.msra.mxu0 %v2206
    %2232 = vmatprep.subr.mxu0 0.0
    %2233 = vmatpush1.msra.mxu0 %v2207
    %2234 = vmatprep.subr.mxu0 0.0
    %2235 = vmatpush1.msra.mxu0 0.0
    %2236 = vmatprep.subr.mxu0 0.0
    %2237 = vmatpush1.msra.mxu0 0.0
    %2238 = vmatprep.subr.mxu0 0.0
    %2239 = vmatpush1.msra.mxu0 0.0
    %2240 = vmatprep.subr.mxu0 0.0
    %2241 = vmatpush1.msra.mxu0 0.0
    %2242 = vmatprep.subr.mxu0 0.0
    %2243 = vmatpush1.msra.mxu0 0.0
    %2244 = vmatprep.subr.mxu0 0.0
    %2245 = vmatpush1.msra.mxu0 0.0
    %2246 = vmatprep.subr.mxu0 0.0
    %2247 = vmatpush1.msra.mxu0 0.0
    %2248 = vmatprep.subr.mxu0 0.0
    %2249 = vmatpush1.msra.mxu0 0.0
    %2250 = vmatprep.subr.mxu0 0.0
    %2251 = vmatpush1.msra.mxu0 0.0
    %2252 = vmatprep.subr.mxu0 0.0
    %2253 = vmatpush1.msra.mxu0 0.0
    %2254 = vmatprep.subr.mxu0 0.0
    %2255 = vmatpush1.msra.mxu0 0.0
    %2256 = vmatprep.subr.mxu0 0.0
    %2257 = vmatpush1.msra.mxu0 0.0
    %2258 = vmatprep.subr.mxu0 0.0
    %2259 = vmatpush1.msra.mxu0 0.0
    %2260 = vmatprep.subr.mxu0 0.0
    %2261 = vmatpush1.msra.mxu0 0.0
    %2262 = vmatprep.subr.mxu0 0.0
    %2263 = vmatpush1.msra.mxu0 0.0
    %2264 = vmatprep.subr.mxu0 0.0
    %2265 = vmatpush1.msra.mxu0 0.0
    %2266 = vmatprep.subr.mxu0 0.0
    %2267 = vmatpush1.msra.mxu0 0.0
    %2268 = vmatprep.subr.mxu0 0.0
    %2269 = vmatpush1.msra.mxu0 0.0
    %2270 = vmatprep.subr.mxu0 0.0
    %2271 = vmatpush1.msra.mxu0 0.0
    %2272 = vmatprep.subr.mxu0 0.0
    %2273 = vmatpush1.msra.mxu0 0.0
    %2274 = vmatprep.subr.mxu0 0.0
    %2275 = vmatpush1.msra.mxu0 0.0
    %2276 = vmatprep.subr.mxu0 0.0
    %2277 = vmatpush1.msra.mxu0 0.0
    %2278 = vmatprep.subr.mxu0 0.0
    %2279 = vmatpush1.msra.mxu0 0.0
    %2280 = vmatprep.subr.mxu0 0.0
    %2281 = vmatpush1.msra.mxu0 0.0
    %2282 = vmatprep.mubr.f32.mxu0 0.0
    %2283 = vmatmul.mubr.f32.gmra.mrb[0].mxu0 %v2216
    %v2284 = vpop.f32.mrb[0].mxu0
    %v2285 = vadd.f32 %v2213, %v2284
    %v2286 = vpop.f32.mrb[0].mxu0
    %2287 = vdwg.mxu0
    %vm2288 = vcmask 74752
    %2289 = vst.msk [vmem:[#allocation3] sm:$0x3] %vm2288, %v2285
    // Predicated region
    $region54: #{conv1d_multi_classifier_forward.1} parent=1 // pred_check
      _
    $region55: #{conv1d_multi_classifier_forward.1} parent=1 // pred_check_branch
      %2291 = sbr.rel (0) target = $region57
    $region56: #{conv1d_multi_classifier_forward.1} parent=1 // pred_region
      %s2293 = ssub.s32 32, 32
      %2294 = vsyncadd [#allocation4], %s2293
      %s2296 = sshll.u32 [#allocation3], 4
      %s2297 = int_to_ptr.vmem [resolvable:$true] %s2296
      %2299 = dma.vmem_to_hbm [thread:$0]  %s2297, 32, %s13, [#allocation4]
    $region57: #{conv1d_multi_classifier_forward.1} parent=1 // pred_fallthru
      _
    // Predicated region
    $region58: #{conv1d_multi_classifier_forward.1} parent=1 // pred_check
      _
    $region59: #{conv1d_multi_classifier_forward.1} parent=1 // pred_check_branch
      %2301 = sbr.rel (0) target = $region61
    $region60: #{conv1d_multi_classifier_forward.1} parent=1 // pred_region
      %2302 = dma.done [#allocation4], 32
    $region61: #{conv1d_multi_classifier_forward.1} parent=1 // pred_fallthru
      _
    %2303 = vsyncpa [#allocation4], 1

</llo_original>
